<compile_context>
chip_gen: v7x
topology: tpu7x:2x2x1
jax: 0.10.0
libtpu: 0.0.40
codegen_flags: <defaults>
</compile_context>

<pallas_src>
import functools

import jax
import jax.numpy as jnp
from jax.experimental import pallas as pl
from jax.experimental.pallas import tpu as pltpu

HIDDEN = 256            # num_neurons_per_hidden_layer
NUM_HIDDEN_LAYERS = 6   # hidden 256->256 layers inside get_net
# shared_net = Linear(in,256)+SELU, 6x(Linear(256,256)+SELU), Linear(256,256), SELU
# -> 1 input layer + 7 square (256->256) layers all followed by SELU, then output_layer.
NUM_SQUARE_LAYERS = NUM_HIDDEN_LAYERS + 1  # = 7

_SELU_ALPHA = 1.6732632423543772
_SELU_SCALE = 1.0507009873554805

MAX_TILE_B = 1024        # biggest batch tile (VMEM use stays < ~6 MiB even here)
MIN_SPLIT_TILE_B = 128   # never shrink below 128 rows just to create a 2nd grid step


def _selu_noscale_bf16(x):
    """SELU without the outer scale (folded into downstream weights), output in bf16.

    `x` is the f32 pre-activation (f32 dot-accum + f32 bias).  The bf16 downcast is
    fused into the activation so the result feeds the next bf16 MXU matmul directly,
    and the exp runs in bf16 on the EUP (v6e/v7x have bf16 EUP/VPU).
    exp(min(x,0)) keeps the discarded branch finite.
    # TODO(synk): on v5e (no bf16 VPU/EUP) an f32 activation path would be marginally
    # faster; kept uniform here since v5e is MXU-bound anyway.
    """
    xb = x.astype(jnp.bfloat16)
    neg = _SELU_ALPHA * (jnp.exp(jnp.minimum(xb, 0.0)) - 1.0)
    return jnp.where(xb > 0.0, xb, neg)


def _mlp_kernel(feat_ref, scal_ref, w_in_f_ref, w_in_s_ref, b_in_ref,
                w_hid_ref, b_hid_ref, w_out_ref, b_out_ref, o_ref):
    # Input layer: cat([f, s], 1) @ W_in == f @ W_in[:Df] + s @ W_in[Df:].
    # bf16 MXU inputs, f32 accumulation.
    h = (jnp.dot(feat_ref[...], w_in_f_ref[...], preferred_element_type=jnp.float32)
         + jnp.dot(scal_ref[...], w_in_s_ref[...], preferred_element_type=jnp.float32))
    h = _selu_noscale_bf16(h + b_in_ref[...])

    # 7 square layers (256 -> 256), each followed by SELU (last one is the
    # final_activation=SELU of get_net).  SELU's scale is pre-folded into w_hid/w_out.
    for i in range(NUM_SQUARE_LAYERS):
        h = jnp.dot(h, w_hid_ref[i], preferred_element_type=jnp.float32)
        h = _selu_noscale_bf16(h + b_hid_ref[i])

    # Output layer: Linear(256, 2*action_dim) padded to O_pad lanes, no activation.
    o_ref[...] = (jnp.dot(h, w_out_ref[...], preferred_element_type=jnp.float32)
                  + b_out_ref[...])


def _round_up(x, m):
    return ((x + m - 1) // m) * m


def _cdiv(a, b):
    return -(-a // b)


def _choose_batch_tiling(B):
    """Pick (tile_b, B_pad, nb).

    Big tiles (up to 1024 rows) amortize the ~0.35 us per-grid-step overhead; once the
    batch is large enough for two >=128-row tiles we always emit >=2 grid steps so the
    "parallel" batch axis can shard across v7x's 2 TensorCores, splitting evenly to
    keep padding minimal.
    """
    B8 = _round_up(max(B, 8), 8)
    if B8 < 2 * MIN_SPLIT_TILE_B:
        tile_b = B8                                   # single tile; too small to split
    else:
        nb_target = max(2, _cdiv(B8, MAX_TILE_B))     # >=2 steps, tiles <= 1024 rows
        tile_b = _round_up(_cdiv(B8, nb_target), 8)   # even split, multiple of 8, >=128
    B_pad = _round_up(B8, tile_b)
    return tile_b, B_pad, B_pad // tile_b


@functools.partial(jax.jit, static_argnames=("out_dim",))
def normal_policy_forward(features, scalars, params, out_dim):
    """features: [B, feature_dim], scalars: [B, scalar_dim] -> [B, 2*action_dim]."""
    w_in_f, w_in_s, b_in, w_hid, b_hid, w_out, b_out = params  # pre-packed (bf16 weights)
    B, Df = features.shape
    Ds = scalars.shape[1]
    O_pad = w_out.shape[1]

    tile_b, B_pad, nb = _choose_batch_tiling(B)

    # Inputs enter unconcatenated and unpadded along the feature axis, already in bf16:
    # only the batch dim is zero-padded (padded rows compute selu(bias) and are sliced
    # away at the end).
    f_p = jnp.pad(features.astype(jnp.bfloat16), ((0, B_pad - B), (0, 0)))
    s_p = jnp.pad(scalars.astype(jnp.bfloat16), ((0, B_pad - B), (0, 0)))

    out_padded = pl.pallas_call(
        _mlp_kernel,
        out_shape=jax.ShapeDtypeStruct((B_pad, O_pad), jnp.float32),
        grid=(nb,),
        in_specs=[
            pl.BlockSpec((tile_b, Df), lambda i: (i, 0)),                            # features tile
            pl.BlockSpec((tile_b, Ds), lambda i: (i, 0)),                            # scalars tile
            pl.BlockSpec((Df, HIDDEN), lambda i: (0, 0)),                            # w_in (feature rows)
            pl.BlockSpec((Ds, HIDDEN), lambda i: (0, 0)),                            # w_in (scalar rows)
            pl.BlockSpec((1, HIDDEN), lambda i: (0, 0)),                             # b_in
            pl.BlockSpec((NUM_SQUARE_LAYERS, HIDDEN, HIDDEN), lambda i: (0, 0, 0)),  # w_hid
            pl.BlockSpec((NUM_SQUARE_LAYERS, 1, HIDDEN), lambda i: (0, 0, 0)),       # b_hid
            pl.BlockSpec((HIDDEN, O_pad), lambda i: (0, 0)),                         # w_out
            pl.BlockSpec((1, O_pad), lambda i: (0, 0)),                              # b_out
        ],
        out_specs=pl.BlockSpec((tile_b, O_pad), lambda i: (i, 0)),
        compiler_params=pltpu.CompilerParams(
            dimension_semantics=("parallel",)),
    )(f_p, s_p, w_in_f, w_in_s, b_in, w_hid, b_hid, w_out, b_out)

    return out_padded[:B, :out_dim]


def init_params(key, feature_dim, scalar_dim, action_dim):
    """PyTorch nn.Linear-style init (U(-1/sqrt(fan_in), 1/sqrt(fan_in))).

    Packs kernel params once: input weight split into feature/scalar rows, all MXU
    weights cast to bf16, SELU's outer scale pre-folded into every weight that consumes
    a SELU output (w_hid[0..6], w_out), output weight/bias zero-padded on the lane axis.
    Also returns the raw f32 params for a full-precision reference check.
    """
    input_dim = feature_dim + scalar_dim
    out_dim = 2 * action_dim
    O_pad = _round_up(max(out_dim, 128), 128)

    keys = jax.random.split(key, 2 * (2 + NUM_SQUARE_LAYERS))
    ki = iter(keys)

    def linear(kw, kb, fan_in, fan_out):
        bound = 1.0 / float(fan_in) ** 0.5
        w = jax.random.uniform(kw, (fan_in, fan_out), jnp.float32, -bound, bound)
        b = jax.random.uniform(kb, (1, fan_out), jnp.float32, -bound, bound)
        return w, b

    w_in, b_in = linear(next(ki), next(ki), input_dim, HIDDEN)

    w_hid_list, b_hid_list = [], []
    for _ in range(NUM_SQUARE_LAYERS):
        w, b = linear(next(ki), next(ki), HIDDEN, HIDDEN)
        w_hid_list.append(w)
        b_hid_list.append(b)

    w_out, b_out = linear(next(ki), next(ki), HIDDEN, out_dim)

    w_hid_f32 = jnp.stack(w_hid_list, axis=0)   # (7, 256, 256) f32
    b_hid_f32 = jnp.stack(b_hid_list, axis=0)   # (7, 1, 256)   f32

    # Kernel params (pad/cast/fold once here, never per-call).
    w_in_f = w_in[:feature_dim, :].astype(jnp.bfloat16)          # (Df, 256) bf16, unscaled
    w_in_s = w_in[feature_dim:, :].astype(jnp.bfloat16)          # (Ds, 256) bf16, unscaled
    w_hid_p = (_SELU_SCALE * w_hid_f32).astype(jnp.bfloat16)     # scale folded in
    w_out_p = (jnp.zeros((HIDDEN, O_pad), jnp.float32)
               .at[:, :out_dim].set(_SELU_SCALE * w_out).astype(jnp.bfloat16))
    b_out_p = jnp.zeros((1, O_pad), jnp.float32).at[:, :out_dim].set(b_out)

    params = (w_in_f, w_in_s, b_in, w_hid_p, b_hid_f32, w_out_p, b_out_p)
    raw = (w_in, b_in, w_hid_f32, b_hid_f32, w_out, b_out)
    return params, raw, out_dim


def reference_forward(features, scalars, params, out_dim):
    """Pure-JAX reference of the exact kernel math (bf16 weights, folded SELU scale)."""
    w_in_f, w_in_s, b_in, w_hid, b_hid, w_out, b_out = params
    f = features.astype(jnp.bfloat16)
    s = scalars.astype(jnp.bfloat16)
    h = (jnp.dot(f, w_in_f, preferred_element_type=jnp.float32)
         + jnp.dot(s, w_in_s, preferred_element_type=jnp.float32))
    h = _selu_noscale_bf16(h + b_in)
    for i in range(NUM_SQUARE_LAYERS):
        h = _selu_noscale_bf16(
            jnp.dot(h, w_hid[i], preferred_element_type=jnp.float32) + b_hid[i])
    o = jnp.dot(h, w_out, preferred_element_type=jnp.float32) + b_out
    return o[:, :out_dim]


def reference_forward_f32(features, scalars, raw):
    """Full-precision reference matching the original PyTorch module's math."""
    w_in, b_in, w_hid, b_hid, w_out, b_out = raw

    def selu(x):
        return _SELU_SCALE * jnp.where(
            x > 0, x, _SELU_ALPHA * jnp.expm1(jnp.minimum(x, 0.0)))

    h = jnp.concatenate([features, scalars], axis=1).astype(jnp.float32)
    h = selu(h @ w_in + b_in)
    for i in range(NUM_SQUARE_LAYERS):
        h = selu(h @ w_hid[i] + b_hid[i])
    return h @ w_out + b_out


if __name__ == "__main__":
    key = jax.random.PRNGKey(0)
    k_feat, k_scal, k_params, k_feat2, k_scal2 = jax.random.split(key, 5)

    feature_dim = 12
    scalar_dim = 4
    action_dim = 3

    params, raw, out_dim = init_params(k_params, feature_dim, scalar_dim, action_dim)

    # Small batch: single (8-row) tile.
    batch = 2
    features = jax.random.normal(k_feat, (batch, feature_dim), jnp.float32)
    scalars = jax.random.normal(k_scal, (batch, scalar_dim), jnp.float32)

    out = jax.block_until_ready(normal_policy_forward(features, scalars, params, out_dim))
    assert out.shape == (batch, 2 * action_dim), out.shape
    ref = reference_forward(features, scalars, params, out_dim)
    assert jnp.allclose(out, ref, atol=2e-2, rtol=2e-2), (out, ref)
    ref32 = reference_forward_f32(features, scalars, raw)
    assert jnp.allclose(out, ref32, atol=5e-2, rtol=5e-2), (out, ref32)

    # Larger batch: exercises the >=2-grid-step path (v7x megacore) and batch padding.
    batch2 = 260
    features2 = jax.random.normal(k_feat2, (batch2, feature_dim), jnp.float32)
    scalars2 = jax.random.normal(k_scal2, (batch2, scalar_dim), jnp.float32)
    out2 = jax.block_until_ready(
        normal_policy_forward(features2, scalars2, params, out_dim))
    assert out2.shape == (batch2, 2 * action_dim), out2.shape
    ref2 = reference_forward(features2, scalars2, params, out_dim)
    assert jnp.allclose(out2, ref2, atol=2e-2, rtol=2e-2), (out2, ref2)

    print("KERNEL_OK")
</pallas_src>

<mosaic_0001>
module attributes {stable_mosaic.version = 11 : i64} {
  func.func @_mlp_kernel(%arg0: i32, %arg1: memref<8x12xbf16, #tpu.memory_space<vmem>>, %arg2: memref<8x4xbf16, #tpu.memory_space<vmem>>, %arg3: memref<12x256xbf16, #tpu.memory_space<vmem>>, %arg4: memref<4x256xbf16, #tpu.memory_space<vmem>>, %arg5: memref<1x256xf32, #tpu.memory_space<vmem>>, %arg6: memref<7x256x256xbf16, #tpu.memory_space<vmem>>, %arg7: memref<7x1x256xf32, #tpu.memory_space<vmem>>, %arg8: memref<256x128xbf16, #tpu.memory_space<vmem>>, %arg9: memref<1x128xf32, #tpu.memory_space<vmem>>, %arg10: memref<8x128xf32, #tpu.memory_space<vmem>>) attributes {dimension_semantics = [#tpu.dimension_semantics<parallel>], iteration_bounds = array<i64: 1>, scalar_prefetch = 0 : i64, scratch_operands = 0 : i64, tpu.core_type = #tpu.core_type<tc>, window_params = [{transform_indices = @transform_0, window_bounds = array<i64: 8, 12>}, {transform_indices = @transform_1, window_bounds = array<i64: 8, 4>}, {pipeline_mode = #tpu.pipeline_mode<synchronous>, transform_indices = @transform_2, window_bounds = array<i64: 12, 256>}, {pipeline_mode = #tpu.pipeline_mode<synchronous>, transform_indices = @transform_3, window_bounds = array<i64: 4, 256>}, {pipeline_mode = #tpu.pipeline_mode<synchronous>, transform_indices = @transform_4, window_bounds = array<i64: 1, 256>}, {pipeline_mode = #tpu.pipeline_mode<synchronous>, transform_indices = @transform_5, window_bounds = array<i64: 7, 256, 256>}, {pipeline_mode = #tpu.pipeline_mode<synchronous>, transform_indices = @transform_6, window_bounds = array<i64: 7, 1, 256>}, {pipeline_mode = #tpu.pipeline_mode<synchronous>, transform_indices = @transform_7, window_bounds = array<i64: 256, 128>}, {pipeline_mode = #tpu.pipeline_mode<synchronous>, transform_indices = @transform_8, window_bounds = array<i64: 1, 128>}, {transform_indices = @transform_9, window_bounds = array<i64: 8, 128>}]} {
    %c0 = arith.constant 0 : index
    %c0_0 = arith.constant 0 : index
    %0 = vector.load %arg1[%c0, %c0_0] : memref<8x12xbf16, #tpu.memory_space<vmem>>, vector<8x12xbf16>
    %c0_1 = arith.constant 0 : index
    %c0_2 = arith.constant 0 : index
    %1 = vector.load %arg3[%c0_1, %c0_2] : memref<12x256xbf16, #tpu.memory_space<vmem>>, vector<12x256xbf16>
    %cst = arith.constant dense<0.000000e+00> : vector<8x256xf32>
    %2 = tpu.matmul %0, %1, %cst {dimension_numbers = #tpu.dot_dimension_numbers<[1], [0], [0], [1], [0, 0, 1, 1], [], []>} : vector<8x12xbf16>, vector<12x256xbf16>, vector<8x256xf32> -> vector<8x256xf32>
    %c0_3 = arith.constant 0 : index
    %c0_4 = arith.constant 0 : index
    %3 = vector.load %arg2[%c0_3, %c0_4] : memref<8x4xbf16, #tpu.memory_space<vmem>>, vector<8x4xbf16>
    %c0_5 = arith.constant 0 : index
    %c0_6 = arith.constant 0 : index
    %4 = vector.load %arg4[%c0_5, %c0_6] : memref<4x256xbf16, #tpu.memory_space<vmem>>, vector<4x256xbf16>
    %cst_7 = arith.constant dense<0.000000e+00> : vector<8x256xf32>
    %5 = tpu.matmul %3, %4, %cst_7 {dimension_numbers = #tpu.dot_dimension_numbers<[1], [0], [0], [1], [0, 0, 1, 1], [], []>} : vector<8x4xbf16>, vector<4x256xbf16>, vector<8x256xf32> -> vector<8x256xf32>
    %6 = arith.addf %2, %5 : vector<8x256xf32>
    %c0_8 = arith.constant 0 : index
    %c0_9 = arith.constant 0 : index
    %7 = vector.load %arg5[%c0_8, %c0_9] : memref<1x256xf32, #tpu.memory_space<vmem>>, vector<1x256xf32>
    %8 = vector.broadcast %7 : vector<1x256xf32> to vector<8x256xf32>
    %9 = arith.addf %6, %8 : vector<8x256xf32>
    %10 = arith.truncf %9 : vector<8x256xf32> to vector<8x256xbf16>
    %cst_10 = arith.constant 0.000000e+00 : bf16
    %11 = vector.broadcast %cst_10 : bf16 to vector<8x256xbf16>
    %12 = arith.minimumf %10, %11 : vector<8x256xbf16>
    %13 = math.exp %12 : vector<8x256xbf16>
    %cst_11 = arith.constant 1.000000e+00 : bf16
    %14 = vector.broadcast %cst_11 : bf16 to vector<8x256xbf16>
    %15 = arith.subf %13, %14 : vector<8x256xbf16>
    %cst_12 = arith.constant 1.671880e+00 : bf16
    %16 = vector.broadcast %cst_12 : bf16 to vector<8x256xbf16>
    %17 = arith.mulf %16, %15 : vector<8x256xbf16>
    %cst_13 = arith.constant 0.000000e+00 : bf16
    %18 = vector.broadcast %cst_13 : bf16 to vector<8x256xbf16>
    %19 = arith.cmpf ogt, %10, %18 : vector<8x256xbf16>
    %20 = arith.select %19, %10, %17 : vector<8x256xi1>, vector<8x256xbf16>
    %c0_14 = arith.constant 0 : index
    %c0_15 = arith.constant 0 : index
    %c0_16 = arith.constant 0 : index
    %21 = vector.load %arg6[%c0_14, %c0_15, %c0_16] : memref<7x256x256xbf16, #tpu.memory_space<vmem>>, vector<1x256x256xbf16>
    %22 = vector.shape_cast %21 : vector<1x256x256xbf16> to vector<256x256xbf16>
    %cst_17 = arith.constant dense<0.000000e+00> : vector<8x256xf32>
    %23 = tpu.matmul %20, %22, %cst_17 {dimension_numbers = #tpu.dot_dimension_numbers<[1], [0], [0], [1], [0, 0, 1, 1], [], []>} : vector<8x256xbf16>, vector<256x256xbf16>, vector<8x256xf32> -> vector<8x256xf32>
    %c0_18 = arith.constant 0 : index
    %c0_19 = arith.constant 0 : index
    %c0_20 = arith.constant 0 : index
    %24 = vector.load %arg7[%c0_18, %c0_19, %c0_20] : memref<7x1x256xf32, #tpu.memory_space<vmem>>, vector<1x1x256xf32>
    %25 = vector.shape_cast %24 : vector<1x1x256xf32> to vector<1x256xf32>
    %26 = vector.broadcast %25 : vector<1x256xf32> to vector<8x256xf32>
    %27 = arith.addf %23, %26 : vector<8x256xf32>
    %28 = arith.truncf %27 : vector<8x256xf32> to vector<8x256xbf16>
    %cst_21 = arith.constant 0.000000e+00 : bf16
    %29 = vector.broadcast %cst_21 : bf16 to vector<8x256xbf16>
    %30 = arith.minimumf %28, %29 : vector<8x256xbf16>
    %31 = math.exp %30 : vector<8x256xbf16>
    %cst_22 = arith.constant 1.000000e+00 : bf16
    %32 = vector.broadcast %cst_22 : bf16 to vector<8x256xbf16>
    %33 = arith.subf %31, %32 : vector<8x256xbf16>
    %cst_23 = arith.constant 1.671880e+00 : bf16
    %34 = vector.broadcast %cst_23 : bf16 to vector<8x256xbf16>
    %35 = arith.mulf %34, %33 : vector<8x256xbf16>
    %cst_24 = arith.constant 0.000000e+00 : bf16
    %36 = vector.broadcast %cst_24 : bf16 to vector<8x256xbf16>
    %37 = arith.cmpf ogt, %28, %36 : vector<8x256xbf16>
    %38 = arith.select %37, %28, %35 : vector<8x256xi1>, vector<8x256xbf16>
    %c1 = arith.constant 1 : index
    %c0_25 = arith.constant 0 : index
    %c0_26 = arith.constant 0 : index
    %39 = vector.load %arg6[%c1, %c0_25, %c0_26] : memref<7x256x256xbf16, #tpu.memory_space<vmem>>, vector<1x256x256xbf16>
    %40 = vector.shape_cast %39 : vector<1x256x256xbf16> to vector<256x256xbf16>
    %cst_27 = arith.constant dense<0.000000e+00> : vector<8x256xf32>
    %41 = tpu.matmul %38, %40, %cst_27 {dimension_numbers = #tpu.dot_dimension_numbers<[1], [0], [0], [1], [0, 0, 1, 1], [], []>} : vector<8x256xbf16>, vector<256x256xbf16>, vector<8x256xf32> -> vector<8x256xf32>
    %c1_28 = arith.constant 1 : index
    %c0_29 = arith.constant 0 : index
    %c0_30 = arith.constant 0 : index
    %42 = vector.load %arg7[%c1_28, %c0_29, %c0_30] : memref<7x1x256xf32, #tpu.memory_space<vmem>>, vector<1x1x256xf32>
    %43 = vector.shape_cast %42 : vector<1x1x256xf32> to vector<1x256xf32>
    %44 = vector.broadcast %43 : vector<1x256xf32> to vector<8x256xf32>
    %45 = arith.addf %41, %44 : vector<8x256xf32>
    %46 = arith.truncf %45 : vector<8x256xf32> to vector<8x256xbf16>
    %cst_31 = arith.constant 0.000000e+00 : bf16
    %47 = vector.broadcast %cst_31 : bf16 to vector<8x256xbf16>
    %48 = arith.minimumf %46, %47 : vector<8x256xbf16>
    %49 = math.exp %48 : vector<8x256xbf16>
    %cst_32 = arith.constant 1.000000e+00 : bf16
    %50 = vector.broadcast %cst_32 : bf16 to vector<8x256xbf16>
    %51 = arith.subf %49, %50 : vector<8x256xbf16>
    %cst_33 = arith.constant 1.671880e+00 : bf16
    %52 = vector.broadcast %cst_33 : bf16 to vector<8x256xbf16>
    %53 = arith.mulf %52, %51 : vector<8x256xbf16>
    %cst_34 = arith.constant 0.000000e+00 : bf16
    %54 = vector.broadcast %cst_34 : bf16 to vector<8x256xbf16>
    %55 = arith.cmpf ogt, %46, %54 : vector<8x256xbf16>
    %56 = arith.select %55, %46, %53 : vector<8x256xi1>, vector<8x256xbf16>
    %c2 = arith.constant 2 : index
    %c0_35 = arith.constant 0 : index
    %c0_36 = arith.constant 0 : index
    %57 = vector.load %arg6[%c2, %c0_35, %c0_36] : memref<7x256x256xbf16, #tpu.memory_space<vmem>>, vector<1x256x256xbf16>
    %58 = vector.shape_cast %57 : vector<1x256x256xbf16> to vector<256x256xbf16>
    %cst_37 = arith.constant dense<0.000000e+00> : vector<8x256xf32>
    %59 = tpu.matmul %56, %58, %cst_37 {dimension_numbers = #tpu.dot_dimension_numbers<[1], [0], [0], [1], [0, 0, 1, 1], [], []>} : vector<8x256xbf16>, vector<256x256xbf16>, vector<8x256xf32> -> vector<8x256xf32>
    %c2_38 = arith.constant 2 : index
    %c0_39 = arith.constant 0 : index
    %c0_40 = arith.constant 0 : index
    %60 = vector.load %arg7[%c2_38, %c0_39, %c0_40] : memref<7x1x256xf32, #tpu.memory_space<vmem>>, vector<1x1x256xf32>
    %61 = vector.shape_cast %60 : vector<1x1x256xf32> to vector<1x256xf32>
    %62 = vector.broadcast %61 : vector<1x256xf32> to vector<8x256xf32>
    %63 = arith.addf %59, %62 : vector<8x256xf32>
    %64 = arith.truncf %63 : vector<8x256xf32> to vector<8x256xbf16>
    %cst_41 = arith.constant 0.000000e+00 : bf16
    %65 = vector.broadcast %cst_41 : bf16 to vector<8x256xbf16>
    %66 = arith.minimumf %64, %65 : vector<8x256xbf16>
    %67 = math.exp %66 : vector<8x256xbf16>
    %cst_42 = arith.constant 1.000000e+00 : bf16
    %68 = vector.broadcast %cst_42 : bf16 to vector<8x256xbf16>
    %69 = arith.subf %67, %68 : vector<8x256xbf16>
    %cst_43 = arith.constant 1.671880e+00 : bf16
    %70 = vector.broadcast %cst_43 : bf16 to vector<8x256xbf16>
    %71 = arith.mulf %70, %69 : vector<8x256xbf16>
    %cst_44 = arith.constant 0.000000e+00 : bf16
    %72 = vector.broadcast %cst_44 : bf16 to vector<8x256xbf16>
    %73 = arith.cmpf ogt, %64, %72 : vector<8x256xbf16>
    %74 = arith.select %73, %64, %71 : vector<8x256xi1>, vector<8x256xbf16>
    %c3 = arith.constant 3 : index
    %c0_45 = arith.constant 0 : index
    %c0_46 = arith.constant 0 : index
    %75 = vector.load %arg6[%c3, %c0_45, %c0_46] : memref<7x256x256xbf16, #tpu.memory_space<vmem>>, vector<1x256x256xbf16>
    %76 = vector.shape_cast %75 : vector<1x256x256xbf16> to vector<256x256xbf16>
    %cst_47 = arith.constant dense<0.000000e+00> : vector<8x256xf32>
    %77 = tpu.matmul %74, %76, %cst_47 {dimension_numbers = #tpu.dot_dimension_numbers<[1], [0], [0], [1], [0, 0, 1, 1], [], []>} : vector<8x256xbf16>, vector<256x256xbf16>, vector<8x256xf32> -> vector<8x256xf32>
    %c3_48 = arith.constant 3 : index
    %c0_49 = arith.constant 0 : index
    %c0_50 = arith.constant 0 : index
    %78 = vector.load %arg7[%c3_48, %c0_49, %c0_50] : memref<7x1x256xf32, #tpu.memory_space<vmem>>, vector<1x1x256xf32>
    %79 = vector.shape_cast %78 : vector<1x1x256xf32> to vector<1x256xf32>
    %80 = vector.broadcast %79 : vector<1x256xf32> to vector<8x256xf32>
    %81 = arith.addf %77, %80 : vector<8x256xf32>
    %82 = arith.truncf %81 : vector<8x256xf32> to vector<8x256xbf16>
    %cst_51 = arith.constant 0.000000e+00 : bf16
    %83 = vector.broadcast %cst_51 : bf16 to vector<8x256xbf16>
    %84 = arith.minimumf %82, %83 : vector<8x256xbf16>
    %85 = math.exp %84 : vector<8x256xbf16>
    %cst_52 = arith.constant 1.000000e+00 : bf16
    %86 = vector.broadcast %cst_52 : bf16 to vector<8x256xbf16>
    %87 = arith.subf %85, %86 : vector<8x256xbf16>
    %cst_53 = arith.constant 1.671880e+00 : bf16
    %88 = vector.broadcast %cst_53 : bf16 to vector<8x256xbf16>
    %89 = arith.mulf %88, %87 : vector<8x256xbf16>
    %cst_54 = arith.constant 0.000000e+00 : bf16
    %90 = vector.broadcast %cst_54 : bf16 to vector<8x256xbf16>
    %91 = arith.cmpf ogt, %82, %90 : vector<8x256xbf16>
    %92 = arith.select %91, %82, %89 : vector<8x256xi1>, vector<8x256xbf16>
    %c4 = arith.constant 4 : index
    %c0_55 = arith.constant 0 : index
    %c0_56 = arith.constant 0 : index
    %93 = vector.load %arg6[%c4, %c0_55, %c0_56] : memref<7x256x256xbf16, #tpu.memory_space<vmem>>, vector<1x256x256xbf16>
    %94 = vector.shape_cast %93 : vector<1x256x256xbf16> to vector<256x256xbf16>
    %cst_57 = arith.constant dense<0.000000e+00> : vector<8x256xf32>
    %95 = tpu.matmul %92, %94, %cst_57 {dimension_numbers = #tpu.dot_dimension_numbers<[1], [0], [0], [1], [0, 0, 1, 1], [], []>} : vector<8x256xbf16>, vector<256x256xbf16>, vector<8x256xf32> -> vector<8x256xf32>
    %c4_58 = arith.constant 4 : index
    %c0_59 = arith.constant 0 : index
    %c0_60 = arith.constant 0 : index
    %96 = vector.load %arg7[%c4_58, %c0_59, %c0_60] : memref<7x1x256xf32, #tpu.memory_space<vmem>>, vector<1x1x256xf32>
    %97 = vector.shape_cast %96 : vector<1x1x256xf32> to vector<1x256xf32>
    %98 = vector.broadcast %97 : vector<1x256xf32> to vector<8x256xf32>
    %99 = arith.addf %95, %98 : vector<8x256xf32>
    %100 = arith.truncf %99 : vector<8x256xf32> to vector<8x256xbf16>
    %cst_61 = arith.constant 0.000000e+00 : bf16
    %101 = vector.broadcast %cst_61 : bf16 to vector<8x256xbf16>
    %102 = arith.minimumf %100, %101 : vector<8x256xbf16>
    %103 = math.exp %102 : vector<8x256xbf16>
    %cst_62 = arith.constant 1.000000e+00 : bf16
    %104 = vector.broadcast %cst_62 : bf16 to vector<8x256xbf16>
    %105 = arith.subf %103, %104 : vector<8x256xbf16>
    %cst_63 = arith.constant 1.671880e+00 : bf16
    %106 = vector.broadcast %cst_63 : bf16 to vector<8x256xbf16>
    %107 = arith.mulf %106, %105 : vector<8x256xbf16>
    %cst_64 = arith.constant 0.000000e+00 : bf16
    %108 = vector.broadcast %cst_64 : bf16 to vector<8x256xbf16>
    %109 = arith.cmpf ogt, %100, %108 : vector<8x256xbf16>
    %110 = arith.select %109, %100, %107 : vector<8x256xi1>, vector<8x256xbf16>
    %c5 = arith.constant 5 : index
    %c0_65 = arith.constant 0 : index
    %c0_66 = arith.constant 0 : index
    %111 = vector.load %arg6[%c5, %c0_65, %c0_66] : memref<7x256x256xbf16, #tpu.memory_space<vmem>>, vector<1x256x256xbf16>
    %112 = vector.shape_cast %111 : vector<1x256x256xbf16> to vector<256x256xbf16>
    %cst_67 = arith.constant dense<0.000000e+00> : vector<8x256xf32>
    %113 = tpu.matmul %110, %112, %cst_67 {dimension_numbers = #tpu.dot_dimension_numbers<[1], [0], [0], [1], [0, 0, 1, 1], [], []>} : vector<8x256xbf16>, vector<256x256xbf16>, vector<8x256xf32> -> vector<8x256xf32>
    %c5_68 = arith.constant 5 : index
    %c0_69 = arith.constant 0 : index
    %c0_70 = arith.constant 0 : index
    %114 = vector.load %arg7[%c5_68, %c0_69, %c0_70] : memref<7x1x256xf32, #tpu.memory_space<vmem>>, vector<1x1x256xf32>
    %115 = vector.shape_cast %114 : vector<1x1x256xf32> to vector<1x256xf32>
    %116 = vector.broadcast %115 : vector<1x256xf32> to vector<8x256xf32>
    %117 = arith.addf %113, %116 : vector<8x256xf32>
    %118 = arith.truncf %117 : vector<8x256xf32> to vector<8x256xbf16>
    %cst_71 = arith.constant 0.000000e+00 : bf16
    %119 = vector.broadcast %cst_71 : bf16 to vector<8x256xbf16>
    %120 = arith.minimumf %118, %119 : vector<8x256xbf16>
    %121 = math.exp %120 : vector<8x256xbf16>
    %cst_72 = arith.constant 1.000000e+00 : bf16
    %122 = vector.broadcast %cst_72 : bf16 to vector<8x256xbf16>
    %123 = arith.subf %121, %122 : vector<8x256xbf16>
    %cst_73 = arith.constant 1.671880e+00 : bf16
    %124 = vector.broadcast %cst_73 : bf16 to vector<8x256xbf16>
    %125 = arith.mulf %124, %123 : vector<8x256xbf16>
    %cst_74 = arith.constant 0.000000e+00 : bf16
    %126 = vector.broadcast %cst_74 : bf16 to vector<8x256xbf16>
    %127 = arith.cmpf ogt, %118, %126 : vector<8x256xbf16>
    %128 = arith.select %127, %118, %125 : vector<8x256xi1>, vector<8x256xbf16>
    %c6 = arith.constant 6 : index
    %c0_75 = arith.constant 0 : index
    %c0_76 = arith.constant 0 : index
    %129 = vector.load %arg6[%c6, %c0_75, %c0_76] : memref<7x256x256xbf16, #tpu.memory_space<vmem>>, vector<1x256x256xbf16>
    %130 = vector.shape_cast %129 : vector<1x256x256xbf16> to vector<256x256xbf16>
    %cst_77 = arith.constant dense<0.000000e+00> : vector<8x256xf32>
    %131 = tpu.matmul %128, %130, %cst_77 {dimension_numbers = #tpu.dot_dimension_numbers<[1], [0], [0], [1], [0, 0, 1, 1], [], []>} : vector<8x256xbf16>, vector<256x256xbf16>, vector<8x256xf32> -> vector<8x256xf32>
    %c6_78 = arith.constant 6 : index
    %c0_79 = arith.constant 0 : index
    %c0_80 = arith.constant 0 : index
    %132 = vector.load %arg7[%c6_78, %c0_79, %c0_80] : memref<7x1x256xf32, #tpu.memory_space<vmem>>, vector<1x1x256xf32>
    %133 = vector.shape_cast %132 : vector<1x1x256xf32> to vector<1x256xf32>
    %134 = vector.broadcast %133 : vector<1x256xf32> to vector<8x256xf32>
    %135 = arith.addf %131, %134 : vector<8x256xf32>
    %136 = arith.truncf %135 : vector<8x256xf32> to vector<8x256xbf16>
    %cst_81 = arith.constant 0.000000e+00 : bf16
    %137 = vector.broadcast %cst_81 : bf16 to vector<8x256xbf16>
    %138 = arith.minimumf %136, %137 : vector<8x256xbf16>
    %139 = math.exp %138 : vector<8x256xbf16>
    %cst_82 = arith.constant 1.000000e+00 : bf16
    %140 = vector.broadcast %cst_82 : bf16 to vector<8x256xbf16>
    %141 = arith.subf %139, %140 : vector<8x256xbf16>
    %cst_83 = arith.constant 1.671880e+00 : bf16
    %142 = vector.broadcast %cst_83 : bf16 to vector<8x256xbf16>
    %143 = arith.mulf %142, %141 : vector<8x256xbf16>
    %cst_84 = arith.constant 0.000000e+00 : bf16
    %144 = vector.broadcast %cst_84 : bf16 to vector<8x256xbf16>
    %145 = arith.cmpf ogt, %136, %144 : vector<8x256xbf16>
    %146 = arith.select %145, %136, %143 : vector<8x256xi1>, vector<8x256xbf16>
    %c0_85 = arith.constant 0 : index
    %c0_86 = arith.constant 0 : index
    %147 = vector.load %arg8[%c0_85, %c0_86] : memref<256x128xbf16, #tpu.memory_space<vmem>>, vector<256x128xbf16>
    %cst_87 = arith.constant dense<0.000000e+00> : vector<8x128xf32>
    %148 = tpu.matmul %146, %147, %cst_87 {dimension_numbers = #tpu.dot_dimension_numbers<[1], [0], [0], [1], [0, 0, 1, 1], [], []>} : vector<8x256xbf16>, vector<256x128xbf16>, vector<8x128xf32> -> vector<8x128xf32>
    %c0_88 = arith.constant 0 : index
    %c0_89 = arith.constant 0 : index
    %149 = vector.load %arg9[%c0_88, %c0_89] : memref<1x128xf32, #tpu.memory_space<vmem>>, vector<1x128xf32>
    %150 = vector.broadcast %149 : vector<1x128xf32> to vector<8x128xf32>
    %151 = arith.addf %148, %150 : vector<8x128xf32>
    %c0_90 = arith.constant 0 : index
    %c0_91 = arith.constant 0 : index
    %152 = vector.load %arg10[%c0_90, %c0_91] : memref<8x128xf32, #tpu.memory_space<vmem>>, vector<8x128xf32>
    tpu.vector_store %arg10[%c0_90, %c0_91], %151 {strides = array<i32>} : memref<8x128xf32, #tpu.memory_space<vmem>>, vector<8x128xf32>,
    return
  }
  func.func @transform_0(%arg0: i32) -> (i32, i32) {
    %c0_i32 = arith.constant 0 : i32
    %c0_i32_0 = arith.constant 0 : i32
    return %arg0, %c0_i32 : i32, i32
  }
  func.func @transform_1(%arg0: i32) -> (i32, i32) {
    %c0_i32 = arith.constant 0 : i32
    %c0_i32_0 = arith.constant 0 : i32
    return %arg0, %c0_i32 : i32, i32
  }
  func.func @transform_2(%arg0: i32) -> (i32, i32) {
    %c0_i32 = arith.constant 0 : i32
    %c0_i32_0 = arith.constant 0 : i32
    %c0_i32_1 = arith.constant 0 : i32
    return %c0_i32, %c0_i32_0 : i32, i32
  }
  func.func @transform_3(%arg0: i32) -> (i32, i32) {
    %c0_i32 = arith.constant 0 : i32
    %c0_i32_0 = arith.constant 0 : i32
    %c0_i32_1 = arith.constant 0 : i32
    return %c0_i32, %c0_i32_0 : i32, i32
  }
  func.func @transform_4(%arg0: i32) -> (i32, i32) {
    %c0_i32 = arith.constant 0 : i32
    %c0_i32_0 = arith.constant 0 : i32
    %c0_i32_1 = arith.constant 0 : i32
    return %c0_i32, %c0_i32_0 : i32, i32
  }
  func.func @transform_5(%arg0: i32) -> (i32, i32, i32) {
    %c0_i32 = arith.constant 0 : i32
    %c0_i32_0 = arith.constant 0 : i32
    %c0_i32_1 = arith.constant 0 : i32
    %c0_i32_2 = arith.constant 0 : i32
    return %c0_i32, %c0_i32_0, %c0_i32_1 : i32, i32, i32
  }
  func.func @transform_6(%arg0: i32) -> (i32, i32, i32) {
    %c0_i32 = arith.constant 0 : i32
    %c0_i32_0 = arith.constant 0 : i32
    %c0_i32_1 = arith.constant 0 : i32
    %c0_i32_2 = arith.constant 0 : i32
    return %c0_i32, %c0_i32_0, %c0_i32_1 : i32, i32, i32
  }
  func.func @transform_7(%arg0: i32) -> (i32, i32) {
    %c0_i32 = arith.constant 0 : i32
    %c0_i32_0 = arith.constant 0 : i32
    %c0_i32_1 = arith.constant 0 : i32
    return %c0_i32, %c0_i32_0 : i32, i32
  }
  func.func @transform_8(%arg0: i32) -> (i32, i32) {
    %c0_i32 = arith.constant 0 : i32
    %c0_i32_0 = arith.constant 0 : i32
    %c0_i32_1 = arith.constant 0 : i32
    return %c0_i32, %c0_i32_0 : i32, i32
  }
  func.func @transform_9(%arg0: i32) -> (i32, i32) {
    %c0_i32 = arith.constant 0 : i32
    %c0_i32_0 = arith.constant 0 : i32
    return %arg0, %c0_i32 : i32, i32
  }
}

</mosaic_0001>

<llo_original>
// kernel: normal_policy_forward.1
$region0: #{normal_policy_forward.1}
  #allocation0 [shape = 'u32[]', space=smem, size = 0x4, offset = 0x4, fixed_abs, tag = 'smem constant byte address 0x4 - core index']
  #allocation1 [shape = 'u32[144,128]{1,0:T(1,128)}', space=vmem, size = 0x12000, scoped, tag = 'internal scratch']
  %s0 = inlined_call_operand.vmem [shape: bf16[8,12], index: 0, kind: input, shape index: {}]
  %s1 = inlined_call_operand.vmem [shape: bf16[8,4], index: 1, kind: input, shape index: {}]
  %s2 = inlined_call_operand.vmem [shape: bf16[12,256], index: 2, kind: input, shape index: {}]
  %s3 = inlined_call_operand.hbm [shape: bf16[4,256], index: 3, kind: input, shape index: {}]
  %s4 = inlined_call_operand.vmem [shape: f32[1,256], index: 4, kind: input, shape index: {}]
  %s5 = inlined_call_operand.hbm [shape: bf16[7,256,256], index: 5, kind: input, shape index: {}]
  %s6 = inlined_call_operand.vmem [shape: f32[7,1,256], index: 6, kind: input, shape index: {}]
  %s7 = inlined_call_operand.hbm [shape: bf16[256,128], index: 7, kind: input, shape index: {}]
  %s8 = inlined_call_operand.vmem [shape: f32[1,128], index: 8, kind: input, shape index: {}]
  %s9 = inlined_call_operand.vmem [shape: f32[8,128], index: 9, kind: output, shape index: {}]
  %s10 = sld [smem:[#allocation0]]
  $region58: #{normal_policy_forward.1} parent=0
    _
  %s12 = ssub.s32 1, %s10
  %s13 = scalar_select 0, %s12, %s10
  $region1: #{normal_policy_forward.1} parent=0
    #allocation2 [shape = 'u8[2048]{0}', space=vmem, size = 0x800, scoped, tag = 'input window, operand 3, single buffered']
    #allocation3 [shape = 's32[1]{0}', space=sflag, size = 0x4, scoped, tag = 'scoped memory for normal_policy_forward.1']
    #allocation4 [shape = 'u8[917504]{0}', space=vmem, size = 0xe0000, scoped, tag = 'input window, operand 5, single buffered']
    #allocation5 [shape = 's32[1]{0}', space=sflag, size = 0x4, scoped, tag = 'scoped memory for normal_policy_forward.1']
    #allocation6 [shape = 'u8[65536]{0}', space=vmem, size = 0x10000, scoped, tag = 'input window, operand 7, single buffered']
    %14 = vsyncpa [#allocation3], 0
    %15 = vsyncpa [#allocation5], 0
    // Predicated region
    $region2: #{normal_policy_forward.1} parent=1 // pred_check
      _
    $region3: #{normal_policy_forward.1} parent=1 // pred_check_branch
      %17 = sbr.rel (0) target = $region5
    $region4: #{normal_policy_forward.1} parent=1 // pred_region
      _
    $region5: #{normal_policy_forward.1} parent=1 // pred_fallthru
      _
    // Predicated region
    $region6: #{normal_policy_forward.1} parent=1 // pred_check
      _
    $region7: #{normal_policy_forward.1} parent=1 // pred_check_branch
      %19 = sbr.rel (0) target = $region9
    $region8: #{normal_policy_forward.1} parent=1 // pred_region
      _
    $region9: #{normal_policy_forward.1} parent=1 // pred_fallthru
      _
    // Predicated region
    $region10: #{normal_policy_forward.1} parent=1 // pred_check
      _
    $region11: #{normal_policy_forward.1} parent=1 // pred_check_branch
      %21 = sbr.rel (0) target = $region13
    $region12: #{normal_policy_forward.1} parent=1 // pred_region
      _
    $region13: #{normal_policy_forward.1} parent=1 // pred_fallthru
      _
    // Predicated region
    $region14: #{normal_policy_forward.1} parent=1 // pred_check
      _
    $region15: #{normal_policy_forward.1} parent=1 // pred_check_branch
      %23 = sbr.rel (0) target = $region17
    $region16: #{normal_policy_forward.1} parent=1 // pred_region
      %s25 = ssub.s32 64, 64
      %26 = vsyncadd [#allocation3], %s25
      %s28 = sshll.u32 [#allocation2], 4
      %s29 = int_to_ptr.vmem [resolvable:$true] %s28
      %31 = dma.hbm_to_vmem [thread:$0]  %s3, 64, %s29, [#allocation3]
    $region17: #{normal_policy_forward.1} parent=1 // pred_fallthru
      _
    // Predicated region
    $region18: #{normal_policy_forward.1} parent=1 // pred_check
      _
    $region19: #{normal_policy_forward.1} parent=1 // pred_check_branch
      %33 = sbr.rel (0) target = $region21
    $region20: #{normal_policy_forward.1} parent=1 // pred_region
      _
    $region21: #{normal_policy_forward.1} parent=1 // pred_fallthru
      _
    // Predicated region
    $region22: #{normal_policy_forward.1} parent=1 // pred_check
      _
    $region23: #{normal_policy_forward.1} parent=1 // pred_check_branch
      %35 = sbr.rel (0) target = $region25
    $region24: #{normal_policy_forward.1} parent=1 // pred_region
      %s37 = ssub.s32 28672, 28672
      %38 = vsyncadd [#allocation5], %s37
      %s39 = sshll.u32 [#allocation4], 4
      %s40 = int_to_ptr.vmem [resolvable:$true] %s39
      %45 = dma.hbm_to_vmem [thread:$0]  %s5, 28672, %s40, [#allocation5], 128, 128, 8
    $region25: #{normal_policy_forward.1} parent=1 // pred_fallthru
      _
    // Predicated region
    $region26: #{normal_policy_forward.1} parent=1 // pred_check
      _
    $region27: #{normal_policy_forward.1} parent=1 // pred_check_branch
      %47 = sbr.rel (0) target = $region29
    $region28: #{normal_policy_forward.1} parent=1 // pred_region
      _
    $region29: #{normal_policy_forward.1} parent=1 // pred_fallthru
      _
    // Predicated region
    $region30: #{normal_policy_forward.1} parent=1 // pred_check
      _
    $region31: #{normal_policy_forward.1} parent=1 // pred_check_branch
      %49 = sbr.rel (0) target = $region33
    $region32: #{normal_policy_forward.1} parent=1 // pred_region
      %s51 = ssub.s32 2048, 2048
      %52 = vsyncadd [#allocation5], %s51
      %s53 = sshll.u32 [#allocation6], 4
      %s54 = int_to_ptr.vmem [resolvable:$true] %s53
      %59 = dma.hbm_to_vmem [thread:$0]  %s7, 2048, %s54, [#allocation5], 64, 64, 4
    $region33: #{normal_policy_forward.1} parent=1 // pred_fallthru
      _
    // Predicated region
    $region34: #{normal_policy_forward.1} parent=1 // pred_check
      _
    $region35: #{normal_policy_forward.1} parent=1 // pred_check_branch
      %61 = sbr.rel (0) target = $region37
    $region36: #{normal_policy_forward.1} parent=1 // pred_region
      _
    $region37: #{normal_policy_forward.1} parent=1 // pred_fallthru
      _
    // Predicated region
    $region38: #{normal_policy_forward.1} parent=1 // pred_check
      _
    $region39: #{normal_policy_forward.1} parent=1 // pred_check_branch
      %63 = sbr.rel (0) target = $region41
    $region40: #{normal_policy_forward.1} parent=1 // pred_region
      %64 = dma.done [#allocation3], 64
    $region41: #{normal_policy_forward.1} parent=1 // pred_fallthru
      _
    // Predicated region
    $region42: #{normal_policy_forward.1} parent=1 // pred_check
      _
    $region43: #{normal_policy_forward.1} parent=1 // pred_check_branch
      %66 = sbr.rel (0) target = $region45
    $region44: #{normal_policy_forward.1} parent=1 // pred_region
      %67 = dma.done [#allocation5], 28672
    $region45: #{normal_policy_forward.1} parent=1 // pred_fallthru
      _
    // Predicated region
    $region46: #{normal_policy_forward.1} parent=1 // pred_check
      _
    $region47: #{normal_policy_forward.1} parent=1 // pred_check_branch
      %69 = sbr.rel (0) target = $region49
    $region48: #{normal_policy_forward.1} parent=1 // pred_region
      %70 = dma.done [#allocation5], 2048
    $region49: #{normal_policy_forward.1} parent=1 // pred_fallthru
      _
    %v74 = vld [vmem:[%s0] sm:$0xf]
    %v75 = vld [vmem:[%s2] sm:$0xff]
    %v76 = vld [vmem:[%s2 + $0x8] sm:$0x33]
    %v77 = vld [vmem:[%s1] sm:$0xf]
    %v78 = vld [vmem:[#allocation2] sm:$0xf]
    %v81 = vunpack.c.l.s4 1983009808
    %v82 = vunpack.c.0.s8 %v81
    %v83 = vlaneseq
    %v84 = vshrl.u32 %v83, 7
    %v85 = vsub.s32 %v82, %v84
    %v86 = vrot.slane %v78, %v85
    %v87 = vcombine.high %v86, %v86
    %vm88 = vcmask 31744
    %v90 = vsel %vm88, %v77, 0
    %vm92 = vcmask 1041408
    %v94 = vsel %vm92, %v86, 0
    %v97 = vsel %vm92, %v87, 0
    %99 = vmatprep.subr.bf16.mxu0 %v97
    %100 = vmatpush1.bf16.msra.mxu0 %v94
    %101 = vmatprep.subr.bf16.mxu0 0
    %102 = vmatpush1.bf16.msra.mxu0 0
    %103 = vmatprep.subr.bf16.mxu0 0
    %104 = vmatpush1.bf16.msra.mxu0 0
    %105 = vmatprep.subr.bf16.mxu0 0
    %106 = vmatpush1.bf16.msra.mxu0 0
    %107 = vmatprep.subr.bf16.mxu0 0
    %108 = vmatpush1.bf16.msra.mxu0 0
    %109 = vmatprep.subr.bf16.mxu0 0
    %110 = vmatpush1.bf16.msra.mxu0 0
    %111 = vmatprep.subr.bf16.mxu0 0
    %112 = vmatpush1.bf16.msra.mxu0 0
    %113 = vmatprep.subr.bf16.mxu0 0
    %114 = vmatpush1.bf16.msra.mxu0 0
    %115 = vmatprep.subr.bf16.mxu0 0
    %116 = vmatpush1.bf16.msra.mxu0 0
    %117 = vmatprep.subr.bf16.mxu0 0
    %118 = vmatpush1.bf16.msra.mxu0 0
    %119 = vmatprep.subr.bf16.mxu0 0
    %120 = vmatpush1.bf16.msra.mxu0 0
    %121 = vmatprep.subr.bf16.mxu0 0
    %122 = vmatpush1.bf16.msra.mxu0 0
    %123 = vmatprep.subr.bf16.mxu0 0
    %124 = vmatpush1.bf16.msra.mxu0 0
    %125 = vmatprep.subr.bf16.mxu0 0
    %126 = vmatpush1.bf16.msra.mxu0 0
    %127 = vmatprep.subr.bf16.mxu0 0
    %128 = vmatpush1.bf16.msra.mxu0 0
    %129 = vmatprep.subr.bf16.mxu0 0
    %130 = vmatpush1.bf16.msra.mxu0 0
    %131 = vmatprep.mubr.bf16.mxu0 0
    %132 = vmatmul.mubr.bf16.gmra.mrb[0].mxu0 %v90
    %v133 = vpop.f32.mrb[0].mxu0
    %v134 = vadd.f32 0.0, %v133
    %v135 = vpop.f32.mrb[0].mxu0
    %v136 = vadd.f32 0.0, %v135
    %v137 = vpop.f32.mrb[0].mxu0
    %v138 = vpop.f32.mrb[0].mxu0
    %139 = vdwg.mxu0
    %v142 = vunpack.c.l.b16 %v75
    %v143 = vunpack.c.h.b16 %v75
    %v144 = vunpack.c.l.b16 %v76
    %v145 = vunpack.c.h.b16 %v76
    %v146 = vpack.c.b16 %v144, %v142
    %v147 = vpack.c.b16 %v145, %v143
    %vm148 = vcmask 97280
    %v150 = vsel %vm148, %v74, 0
    %vm152 = vcmask 1045504
    %v154 = vsel %vm152, %v146, 0
    %v157 = vsel %vm152, %v147, 0
    %159 = vmatprep.subr.bf16.mxu0 %v157
    %160 = vmatpush1.bf16.msra.mxu0 %v154
    %161 = vmatprep.subr.bf16.mxu0 0
    %162 = vmatpush1.bf16.msra.mxu0 0
    %163 = vmatprep.subr.bf16.mxu0 0
    %164 = vmatpush1.bf16.msra.mxu0 0
    %165 = vmatprep.subr.bf16.mxu0 0
    %166 = vmatpush1.bf16.msra.mxu0 0
    %167 = vmatprep.subr.bf16.mxu0 0
    %168 = vmatpush1.bf16.msra.mxu0 0
    %169 = vmatprep.subr.bf16.mxu0 0
    %170 = vmatpush1.bf16.msra.mxu0 0
    %171 = vmatprep.subr.bf16.mxu0 0
    %172 = vmatpush1.bf16.msra.mxu0 0
    %173 = vmatprep.subr.bf16.mxu0 0
    %174 = vmatpush1.bf16.msra.mxu0 0
    %175 = vmatprep.subr.bf16.mxu0 0
    %176 = vmatpush1.bf16.msra.mxu0 0
    %177 = vmatprep.subr.bf16.mxu0 0
    %178 = vmatpush1.bf16.msra.mxu0 0
    %179 = vmatprep.subr.bf16.mxu0 0
    %180 = vmatpush1.bf16.msra.mxu0 0
    %181 = vmatprep.subr.bf16.mxu0 0
    %182 = vmatpush1.bf16.msra.mxu0 0
    %183 = vmatprep.subr.bf16.mxu0 0
    %184 = vmatpush1.bf16.msra.mxu0 0
    %185 = vmatprep.subr.bf16.mxu0 0
    %186 = vmatpush1.bf16.msra.mxu0 0
    %187 = vmatprep.subr.bf16.mxu0 0
    %188 = vmatpush1.bf16.msra.mxu0 0
    %189 = vmatprep.subr.bf16.mxu0 0
    %190 = vmatpush1.bf16.msra.mxu0 0
    %191 = vmatprep.mubr.bf16.mxu0 0
    %192 = vmatmul.mubr.bf16.gmra.mrb[0].mxu0 %v150
    %v193 = vpop.f32.mrb[0].mxu0
    %v194 = vadd.f32 %v134, %v193
    %v195 = vpop.f32.mrb[0].mxu0
    %v196 = vadd.f32 %v136, %v195
    %v197 = vpop.f32.mrb[0].mxu0
    %v198 = vpop.f32.mrb[0].mxu0
    %199 = vdwg.mxu0
    %v200 = vld [vmem:[%s4] sm:$0x3]
    %v202 = vlaneseq
    %v203 = vshrl.u32 %v202, 7
    %v204 = vsub.s32 0, %v203
    %v205 = vrot.slane %v200, %v204
    %v206 = vlaneseq
    %v207 = vshrl.u32 %v206, 7
    %v208 = vsub.s32 1, %v207
    %v209 = vrot.slane %v200, %v208
    %v212 = vadd.f32 %v194, %v205
    %v213 = vadd.f32 %v196, %v209
    %v214 = vpack.c.bf16 %v212, %v212
    %v215 = vpack.c.bf16 %v213, %v213
    %v216 = vmin.bf16 %v214, 0
    %v217 = vmin.bf16 %v215, 0
    %v219 = vmul.bf16 %v216, 1069105081
    %v220 = vpow.bf16.pop %v219
    %v222 = vmul.bf16 %v217, 1069105081
    %v223 = vpow.bf16.pop %v222
    %v224 = vsub.bf16 %v220, 1065369472
    %v225 = vsub.bf16 %v223, 1065369472
    %v226 = vmul.bf16 %v224, 1071005654
    %v227 = vmul.bf16 %v225, 1071005654
    %vm228 = vcmp.gt.bf16.partialorder %v214, 0
    %vm229 = vcmp.gt.bf16.partialorder %v215, 0
    %v230 = vsel %vm228, %v214, %v226
    %v231 = vsel %vm229, %v215, %v227
    %v232 = vld [vmem:[#allocation4] sm:$0xff]
    %v233 = vld [vmem:[#allocation4 + $0x8] sm:$0xff]
    %v234 = vld [vmem:[#allocation4 + $0x10] sm:$0xff]
    %v235 = vld [vmem:[#allocation4 + $0x18] sm:$0xff]
    %v236 = vld [vmem:[#allocation4 + $0x20] sm:$0xff]
    %v237 = vld [vmem:[#allocation4 + $0x28] sm:$0xff]
    %v238 = vld [vmem:[#allocation4 + $0x30] sm:$0xff]
    %v239 = vld [vmem:[#allocation4 + $0x38] sm:$0xff]
    %v240 = vld [vmem:[#allocation4 + $0x40] sm:$0xff]
    %v241 = vld [vmem:[#allocation4 + $0x48] sm:$0xff]
    %v242 = vld [vmem:[#allocation4 + $0x50] sm:$0xff]
    %v243 = vld [vmem:[#allocation4 + $0x58] sm:$0xff]
    %v244 = vld [vmem:[#allocation4 + $0x60] sm:$0xff]
    %v245 = vld [vmem:[#allocation4 + $0x68] sm:$0xff]
    %v246 = vld [vmem:[#allocation4 + $0x70] sm:$0xff]
    %v247 = vld [vmem:[#allocation4 + $0x78] sm:$0xff]
    %v248 = vld [vmem:[#allocation4 + $0x80] sm:$0xff]
    %v249 = vld [vmem:[#allocation4 + $0x88] sm:$0xff]
    %v250 = vld [vmem:[#allocation4 + $0x90] sm:$0xff]
    %v251 = vld [vmem:[#allocation4 + $0x98] sm:$0xff]
    %v252 = vld [vmem:[#allocation4 + $0xa0] sm:$0xff]
    %v253 = vld [vmem:[#allocation4 + $0xa8] sm:$0xff]
    %v254 = vld [vmem:[#allocation4 + $0xb0] sm:$0xff]
    %v255 = vld [vmem:[#allocation4 + $0xb8] sm:$0xff]
    %v256 = vld [vmem:[#allocation4 + $0xc0] sm:$0xff]
    %v257 = vld [vmem:[#allocation4 + $0xc8] sm:$0xff]
    %v258 = vld [vmem:[#allocation4 + $0xd0] sm:$0xff]
    %v259 = vld [vmem:[#allocation4 + $0xd8] sm:$0xff]
    %v260 = vld [vmem:[#allocation4 + $0xe0] sm:$0xff]
    %v261 = vld [vmem:[#allocation4 + $0xe8] sm:$0xff]
    %v262 = vld [vmem:[#allocation4 + $0xf0] sm:$0xff]
    %v263 = vld [vmem:[#allocation4 + $0xf8] sm:$0xff]
    %v264 = vld [vmem:[%s6] sm:$0x3]
    %v266 = vlaneseq
    %v267 = vshrl.u32 %v266, 7
    %v268 = vsub.s32 0, %v267
    %v269 = vrot.slane %v264, %v268
    %v270 = vlaneseq
    %v271 = vshrl.u32 %v270, 7
    %v272 = vsub.s32 1, %v271
    %v273 = vrot.slane %v264, %v272
    %v308 = vunpack.c.l.b16 %v232
    %v309 = vunpack.c.h.b16 %v232
    %v310 = vunpack.c.l.b16 %v233
    %v311 = vunpack.c.h.b16 %v233
    %v312 = vunpack.c.l.b16 %v234
    %v313 = vunpack.c.h.b16 %v234
    %v314 = vunpack.c.l.b16 %v235
    %v315 = vunpack.c.h.b16 %v235
    %v316 = vunpack.c.l.b16 %v236
    %v317 = vunpack.c.h.b16 %v236
    %v318 = vunpack.c.l.b16 %v237
    %v319 = vunpack.c.h.b16 %v237
    %v320 = vunpack.c.l.b16 %v238
    %v321 = vunpack.c.h.b16 %v238
    %v322 = vunpack.c.l.b16 %v239
    %v323 = vunpack.c.h.b16 %v239
    %v324 = vunpack.c.l.b16 %v240
    %v325 = vunpack.c.h.b16 %v240
    %v326 = vunpack.c.l.b16 %v241
    %v327 = vunpack.c.h.b16 %v241
    %v328 = vunpack.c.l.b16 %v242
    %v329 = vunpack.c.h.b16 %v242
    %v330 = vunpack.c.l.b16 %v243
    %v331 = vunpack.c.h.b16 %v243
    %v332 = vunpack.c.l.b16 %v244
    %v333 = vunpack.c.h.b16 %v244
    %v334 = vunpack.c.l.b16 %v245
    %v335 = vunpack.c.h.b16 %v245
    %v336 = vunpack.c.l.b16 %v246
    %v337 = vunpack.c.h.b16 %v246
    %v338 = vunpack.c.l.b16 %v247
    %v339 = vunpack.c.h.b16 %v247
    %v340 = vunpack.c.l.b16 %v248
    %v341 = vunpack.c.h.b16 %v248
    %v342 = vunpack.c.l.b16 %v249
    %v343 = vunpack.c.h.b16 %v249
    %v344 = vunpack.c.l.b16 %v250
    %v345 = vunpack.c.h.b16 %v250
    %v346 = vunpack.c.l.b16 %v251
    %v347 = vunpack.c.h.b16 %v251
    %v348 = vunpack.c.l.b16 %v252
    %v349 = vunpack.c.h.b16 %v252
    %v350 = vunpack.c.l.b16 %v253
    %v351 = vunpack.c.h.b16 %v253
    %v352 = vunpack.c.l.b16 %v254
    %v353 = vunpack.c.h.b16 %v254
    %v354 = vunpack.c.l.b16 %v255
    %v355 = vunpack.c.h.b16 %v255
    %v356 = vunpack.c.l.b16 %v256
    %v357 = vunpack.c.h.b16 %v256
    %v358 = vunpack.c.l.b16 %v257
    %v359 = vunpack.c.h.b16 %v257
    %v360 = vunpack.c.l.b16 %v258
    %v361 = vunpack.c.h.b16 %v258
    %v362 = vunpack.c.l.b16 %v259
    %v363 = vunpack.c.h.b16 %v259
    %v364 = vunpack.c.l.b16 %v260
    %v365 = vunpack.c.h.b16 %v260
    %v366 = vunpack.c.l.b16 %v261
    %v367 = vunpack.c.h.b16 %v261
    %v368 = vunpack.c.l.b16 %v262
    %v369 = vunpack.c.h.b16 %v262
    %v370 = vunpack.c.l.b16 %v263
    %v371 = vunpack.c.h.b16 %v263
    %v372 = vpack.c.b16 %v310, %v308
    %v373 = vpack.c.b16 %v311, %v309
    %v374 = vpack.c.b16 %v314, %v312
    %v375 = vpack.c.b16 %v315, %v313
    %v376 = vpack.c.b16 %v318, %v316
    %v377 = vpack.c.b16 %v319, %v317
    %v378 = vpack.c.b16 %v322, %v320
    %v379 = vpack.c.b16 %v323, %v321
    %v380 = vpack.c.b16 %v326, %v324
    %v381 = vpack.c.b16 %v327, %v325
    %v382 = vpack.c.b16 %v330, %v328
    %v383 = vpack.c.b16 %v331, %v329
    %v384 = vpack.c.b16 %v334, %v332
    %v385 = vpack.c.b16 %v335, %v333
    %v386 = vpack.c.b16 %v338, %v336
    %v387 = vpack.c.b16 %v339, %v337
    %v388 = vpack.c.b16 %v342, %v340
    %v389 = vpack.c.b16 %v343, %v341
    %v390 = vpack.c.b16 %v346, %v344
    %v391 = vpack.c.b16 %v347, %v345
    %v392 = vpack.c.b16 %v350, %v348
    %v393 = vpack.c.b16 %v351, %v349
    %v394 = vpack.c.b16 %v354, %v352
    %v395 = vpack.c.b16 %v355, %v353
    %v396 = vpack.c.b16 %v358, %v356
    %v397 = vpack.c.b16 %v359, %v357
    %v398 = vpack.c.b16 %v362, %v360
    %v399 = vpack.c.b16 %v363, %v361
    %v400 = vpack.c.b16 %v366, %v364
    %v401 = vpack.c.b16 %v367, %v365
    %v402 = vpack.c.b16 %v370, %v368
    %v403 = vpack.c.b16 %v371, %v369
    %436 = vmatprep.subr.bf16.mxu0 %v373
    %437 = vmatpush1.bf16.msra.mxu0 %v372
    %438 = vmatprep.subr.bf16.mxu0 %v375
    %439 = vmatpush1.bf16.msra.mxu0 %v374
    %440 = vmatprep.subr.bf16.mxu0 %v377
    %441 = vmatpush1.bf16.msra.mxu0 %v376
    %442 = vmatprep.subr.bf16.mxu0 %v379
    %443 = vmatpush1.bf16.msra.mxu0 %v378
    %444 = vmatprep.subr.bf16.mxu0 %v381
    %445 = vmatpush1.bf16.msra.mxu0 %v380
    %446 = vmatprep.subr.bf16.mxu0 %v383
    %447 = vmatpush1.bf16.msra.mxu0 %v382
    %448 = vmatprep.subr.bf16.mxu0 %v385
    %449 = vmatpush1.bf16.msra.mxu0 %v384
    %450 = vmatprep.subr.bf16.mxu0 %v387
    %451 = vmatpush1.bf16.msra.mxu0 %v386
    %452 = vmatprep.subr.bf16.mxu0 %v389
    %453 = vmatpush1.bf16.msra.mxu0 %v388
    %454 = vmatprep.subr.bf16.mxu0 %v391
    %455 = vmatpush1.bf16.msra.mxu0 %v390
    %456 = vmatprep.subr.bf16.mxu0 %v393
    %457 = vmatpush1.bf16.msra.mxu0 %v392
    %458 = vmatprep.subr.bf16.mxu0 %v395
    %459 = vmatpush1.bf16.msra.mxu0 %v394
    %460 = vmatprep.subr.bf16.mxu0 %v397
    %461 = vmatpush1.bf16.msra.mxu0 %v396
    %462 = vmatprep.subr.bf16.mxu0 %v399
    %463 = vmatpush1.bf16.msra.mxu0 %v398
    %464 = vmatprep.subr.bf16.mxu0 %v401
    %465 = vmatpush1.bf16.msra.mxu0 %v400
    %466 = vmatprep.subr.bf16.mxu0 %v403
    %467 = vmatpush1.bf16.msra.mxu0 %v402
    %468 = vmatprep.mubr.bf16.mxu0 %v231
    %469 = vmatmul.mubr.bf16.gmra.mrb[0].mxu0 %v230
    %v470 = vpop.f32.mrb[0].mxu0
    %v471 = vadd.f32 %v269, %v470
    %v472 = vpop.f32.mrb[0].mxu0
    %v473 = vadd.f32 %v273, %v472
    %v474 = vpop.f32.mrb[0].mxu0
    %v475 = vpop.f32.mrb[0].mxu0
    %476 = vdwg.mxu0
    %v477 = vpack.c.bf16 %v471, %v471
    %v478 = vpack.c.bf16 %v473, %v473
    %v479 = vmin.bf16 %v477, 0
    %v480 = vmin.bf16 %v478, 0
    %v482 = vmul.bf16 %v479, 1069105081
    %v483 = vpow.bf16.pop %v482
    %v485 = vmul.bf16 %v480, 1069105081
    %v486 = vpow.bf16.pop %v485
    %v487 = vsub.bf16 %v483, 1065369472
    %v488 = vsub.bf16 %v486, 1065369472
    %v489 = vmul.bf16 %v487, 1071005654
    %v490 = vmul.bf16 %v488, 1071005654
    %vm491 = vcmp.gt.bf16.partialorder %v477, 0
    %vm492 = vcmp.gt.bf16.partialorder %v478, 0
    %v493 = vsel %vm491, %v477, %v489
    %v494 = vsel %vm492, %v478, %v490
    %s495 = scalar_lea.vmem [#allocation4], 256
    %v496 = vld [vmem:[%s495] sm:$0xff]
    %v497 = vld [vmem:[%s495 + $0x8] sm:$0xff]
    %v498 = vld [vmem:[%s495 + $0x10] sm:$0xff]
    %v499 = vld [vmem:[%s495 + $0x18] sm:$0xff]
    %v500 = vld [vmem:[%s495 + $0x20] sm:$0xff]
    %v501 = vld [vmem:[%s495 + $0x28] sm:$0xff]
    %v502 = vld [vmem:[%s495 + $0x30] sm:$0xff]
    %v503 = vld [vmem:[%s495 + $0x38] sm:$0xff]
    %v504 = vld [vmem:[%s495 + $0x40] sm:$0xff]
    %v505 = vld [vmem:[%s495 + $0x48] sm:$0xff]
    %v506 = vld [vmem:[%s495 + $0x50] sm:$0xff]
    %v507 = vld [vmem:[%s495 + $0x58] sm:$0xff]
    %v508 = vld [vmem:[%s495 + $0x60] sm:$0xff]
    %v509 = vld [vmem:[%s495 + $0x68] sm:$0xff]
    %v510 = vld [vmem:[%s495 + $0x70] sm:$0xff]
    %v511 = vld [vmem:[%s495 + $0x78] sm:$0xff]
    %v512 = vld [vmem:[%s495 + $0x80] sm:$0xff]
    %v513 = vld [vmem:[%s495 + $0x88] sm:$0xff]
    %v514 = vld [vmem:[%s495 + $0x90] sm:$0xff]
    %v515 = vld [vmem:[%s495 + $0x98] sm:$0xff]
    %v516 = vld [vmem:[%s495 + $0xa0] sm:$0xff]
    %v517 = vld [vmem:[%s495 + $0xa8] sm:$0xff]
    %v518 = vld [vmem:[%s495 + $0xb0] sm:$0xff]
    %v519 = vld [vmem:[%s495 + $0xb8] sm:$0xff]
    %v520 = vld [vmem:[%s495 + $0xc0] sm:$0xff]
    %v521 = vld [vmem:[%s495 + $0xc8] sm:$0xff]
    %v522 = vld [vmem:[%s495 + $0xd0] sm:$0xff]
    %v523 = vld [vmem:[%s495 + $0xd8] sm:$0xff]
    %v524 = vld [vmem:[%s495 + $0xe0] sm:$0xff]
    %v525 = vld [vmem:[%s495 + $0xe8] sm:$0xff]
    %v526 = vld [vmem:[%s495 + $0xf0] sm:$0xff]
    %v527 = vld [vmem:[%s495 + $0xf8] sm:$0xff]
    %s528 = scalar_lea.vmem %s6, 2
    %v529 = vld [vmem:[%s528] sm:$0x3]
    %v531 = vlaneseq
    %v532 = vshrl.u32 %v531, 7
    %v533 = vsub.s32 0, %v532
    %v534 = vrot.slane %v529, %v533
    %v535 = vlaneseq
    %v536 = vshrl.u32 %v535, 7
    %v537 = vsub.s32 1, %v536
    %v538 = vrot.slane %v529, %v537
    %v573 = vunpack.c.l.b16 %v496
    %v574 = vunpack.c.h.b16 %v496
    %v575 = vunpack.c.l.b16 %v497
    %v576 = vunpack.c.h.b16 %v497
    %v577 = vunpack.c.l.b16 %v498
    %v578 = vunpack.c.h.b16 %v498
    %v579 = vunpack.c.l.b16 %v499
    %v580 = vunpack.c.h.b16 %v499
    %v581 = vunpack.c.l.b16 %v500
    %v582 = vunpack.c.h.b16 %v500
    %v583 = vunpack.c.l.b16 %v501
    %v584 = vunpack.c.h.b16 %v501
    %v585 = vunpack.c.l.b16 %v502
    %v586 = vunpack.c.h.b16 %v502
    %v587 = vunpack.c.l.b16 %v503
    %v588 = vunpack.c.h.b16 %v503
    %v589 = vunpack.c.l.b16 %v504
    %v590 = vunpack.c.h.b16 %v504
    %v591 = vunpack.c.l.b16 %v505
    %v592 = vunpack.c.h.b16 %v505
    %v593 = vunpack.c.l.b16 %v506
    %v594 = vunpack.c.h.b16 %v506
    %v595 = vunpack.c.l.b16 %v507
    %v596 = vunpack.c.h.b16 %v507
    %v597 = vunpack.c.l.b16 %v508
    %v598 = vunpack.c.h.b16 %v508
    %v599 = vunpack.c.l.b16 %v509
    %v600 = vunpack.c.h.b16 %v509
    %v601 = vunpack.c.l.b16 %v510
    %v602 = vunpack.c.h.b16 %v510
    %v603 = vunpack.c.l.b16 %v511
    %v604 = vunpack.c.h.b16 %v511
    %v605 = vunpack.c.l.b16 %v512
    %v606 = vunpack.c.h.b16 %v512
    %v607 = vunpack.c.l.b16 %v513
    %v608 = vunpack.c.h.b16 %v513
    %v609 = vunpack.c.l.b16 %v514
    %v610 = vunpack.c.h.b16 %v514
    %v611 = vunpack.c.l.b16 %v515
    %v612 = vunpack.c.h.b16 %v515
    %v613 = vunpack.c.l.b16 %v516
    %v614 = vunpack.c.h.b16 %v516
    %v615 = vunpack.c.l.b16 %v517
    %v616 = vunpack.c.h.b16 %v517
    %v617 = vunpack.c.l.b16 %v518
    %v618 = vunpack.c.h.b16 %v518
    %v619 = vunpack.c.l.b16 %v519
    %v620 = vunpack.c.h.b16 %v519
    %v621 = vunpack.c.l.b16 %v520
    %v622 = vunpack.c.h.b16 %v520
    %v623 = vunpack.c.l.b16 %v521
    %v624 = vunpack.c.h.b16 %v521
    %v625 = vunpack.c.l.b16 %v522
    %v626 = vunpack.c.h.b16 %v522
    %v627 = vunpack.c.l.b16 %v523
    %v628 = vunpack.c.h.b16 %v523
    %v629 = vunpack.c.l.b16 %v524
    %v630 = vunpack.c.h.b16 %v524
    %v631 = vunpack.c.l.b16 %v525
    %v632 = vunpack.c.h.b16 %v525
    %v633 = vunpack.c.l.b16 %v526
    %v634 = vunpack.c.h.b16 %v526
    %v635 = vunpack.c.l.b16 %v527
    %v636 = vunpack.c.h.b16 %v527
    %v637 = vpack.c.b16 %v575, %v573
    %v638 = vpack.c.b16 %v576, %v574
    %v639 = vpack.c.b16 %v579, %v577
    %v640 = vpack.c.b16 %v580, %v578
    %v641 = vpack.c.b16 %v583, %v581
    %v642 = vpack.c.b16 %v584, %v582
    %v643 = vpack.c.b16 %v587, %v585
    %v644 = vpack.c.b16 %v588, %v586
    %v645 = vpack.c.b16 %v591, %v589
    %v646 = vpack.c.b16 %v592, %v590
    %v647 = vpack.c.b16 %v595, %v593
    %v648 = vpack.c.b16 %v596, %v594
    %v649 = vpack.c.b16 %v599, %v597
    %v650 = vpack.c.b16 %v600, %v598
    %v651 = vpack.c.b16 %v603, %v601
    %v652 = vpack.c.b16 %v604, %v602
    %v653 = vpack.c.b16 %v607, %v605
    %v654 = vpack.c.b16 %v608, %v606
    %v655 = vpack.c.b16 %v611, %v609
    %v656 = vpack.c.b16 %v612, %v610
    %v657 = vpack.c.b16 %v615, %v613
    %v658 = vpack.c.b16 %v616, %v614
    %v659 = vpack.c.b16 %v619, %v617
    %v660 = vpack.c.b16 %v620, %v618
    %v661 = vpack.c.b16 %v623, %v621
    %v662 = vpack.c.b16 %v624, %v622
    %v663 = vpack.c.b16 %v627, %v625
    %v664 = vpack.c.b16 %v628, %v626
    %v665 = vpack.c.b16 %v631, %v629
    %v666 = vpack.c.b16 %v632, %v630
    %v667 = vpack.c.b16 %v635, %v633
    %v668 = vpack.c.b16 %v636, %v634
    %701 = vmatprep.subr.bf16.mxu0 %v638
    %702 = vmatpush1.bf16.msra.mxu0 %v637
    %703 = vmatprep.subr.bf16.mxu0 %v640
    %704 = vmatpush1.bf16.msra.mxu0 %v639
    %705 = vmatprep.subr.bf16.mxu0 %v642
    %706 = vmatpush1.bf16.msra.mxu0 %v641
    %707 = vmatprep.subr.bf16.mxu0 %v644
    %708 = vmatpush1.bf16.msra.mxu0 %v643
    %709 = vmatprep.subr.bf16.mxu0 %v646
    %710 = vmatpush1.bf16.msra.mxu0 %v645
    %711 = vmatprep.subr.bf16.mxu0 %v648
    %712 = vmatpush1.bf16.msra.mxu0 %v647
    %713 = vmatprep.subr.bf16.mxu0 %v650
    %714 = vmatpush1.bf16.msra.mxu0 %v649
    %715 = vmatprep.subr.bf16.mxu0 %v652
    %716 = vmatpush1.bf16.msra.mxu0 %v651
    %717 = vmatprep.subr.bf16.mxu0 %v654
    %718 = vmatpush1.bf16.msra.mxu0 %v653
    %719 = vmatprep.subr.bf16.mxu0 %v656
    %720 = vmatpush1.bf16.msra.mxu0 %v655
    %721 = vmatprep.subr.bf16.mxu0 %v658
    %722 = vmatpush1.bf16.msra.mxu0 %v657
    %723 = vmatprep.subr.bf16.mxu0 %v660
    %724 = vmatpush1.bf16.msra.mxu0 %v659
    %725 = vmatprep.subr.bf16.mxu0 %v662
    %726 = vmatpush1.bf16.msra.mxu0 %v661
    %727 = vmatprep.subr.bf16.mxu0 %v664
    %728 = vmatpush1.bf16.msra.mxu0 %v663
    %729 = vmatprep.subr.bf16.mxu0 %v666
    %730 = vmatpush1.bf16.msra.mxu0 %v665
    %731 = vmatprep.subr.bf16.mxu0 %v668
    %732 = vmatpush1.bf16.msra.mxu0 %v667
    %733 = vmatprep.mubr.bf16.mxu0 %v494
    %734 = vmatmul.mubr.bf16.gmra.mrb[0].mxu0 %v493
    %v735 = vpop.f32.mrb[0].mxu0
    %v736 = vadd.f32 %v534, %v735
    %v737 = vpop.f32.mrb[0].mxu0
    %v738 = vadd.f32 %v538, %v737
    %v739 = vpop.f32.mrb[0].mxu0
    %v740 = vpop.f32.mrb[0].mxu0
    %741 = vdwg.mxu0
    %v742 = vpack.c.bf16 %v736, %v736
    %v743 = vpack.c.bf16 %v738, %v738
    %v744 = vmin.bf16 %v742, 0
    %v745 = vmin.bf16 %v743, 0
    %v747 = vmul.bf16 %v744, 1069105081
    %v748 = vpow.bf16.pop %v747
    %v750 = vmul.bf16 %v745, 1069105081
    %v751 = vpow.bf16.pop %v750
    %v752 = vsub.bf16 %v748, 1065369472
    %v753 = vsub.bf16 %v751, 1065369472
    %v754 = vmul.bf16 %v752, 1071005654
    %v755 = vmul.bf16 %v753, 1071005654
    %vm756 = vcmp.gt.bf16.partialorder %v742, 0
    %vm757 = vcmp.gt.bf16.partialorder %v743, 0
    %v758 = vsel %vm756, %v742, %v754
    %v759 = vsel %vm757, %v743, %v755
    %s760 = scalar_lea.vmem [#allocation4], 512
    %v761 = vld [vmem:[%s760] sm:$0xff]
    %v762 = vld [vmem:[%s760 + $0x8] sm:$0xff]
    %v763 = vld [vmem:[%s760 + $0x10] sm:$0xff]
    %v764 = vld [vmem:[%s760 + $0x18] sm:$0xff]
    %v765 = vld [vmem:[%s760 + $0x20] sm:$0xff]
    %v766 = vld [vmem:[%s760 + $0x28] sm:$0xff]
    %v767 = vld [vmem:[%s760 + $0x30] sm:$0xff]
    %v768 = vld [vmem:[%s760 + $0x38] sm:$0xff]
    %v769 = vld [vmem:[%s760 + $0x40] sm:$0xff]
    %v770 = vld [vmem:[%s760 + $0x48] sm:$0xff]
    %v771 = vld [vmem:[%s760 + $0x50] sm:$0xff]
    %v772 = vld [vmem:[%s760 + $0x58] sm:$0xff]
    %v773 = vld [vmem:[%s760 + $0x60] sm:$0xff]
    %v774 = vld [vmem:[%s760 + $0x68] sm:$0xff]
    %v775 = vld [vmem:[%s760 + $0x70] sm:$0xff]
    %v776 = vld [vmem:[%s760 + $0x78] sm:$0xff]
    %v777 = vld [vmem:[%s760 + $0x80] sm:$0xff]
    %v778 = vld [vmem:[%s760 + $0x88] sm:$0xff]
    %v779 = vld [vmem:[%s760 + $0x90] sm:$0xff]
    %v780 = vld [vmem:[%s760 + $0x98] sm:$0xff]
    %v781 = vld [vmem:[%s760 + $0xa0] sm:$0xff]
    %v782 = vld [vmem:[%s760 + $0xa8] sm:$0xff]
    %v783 = vld [vmem:[%s760 + $0xb0] sm:$0xff]
    %v784 = vld [vmem:[%s760 + $0xb8] sm:$0xff]
    %v785 = vld [vmem:[%s760 + $0xc0] sm:$0xff]
    %v786 = vld [vmem:[%s760 + $0xc8] sm:$0xff]
    %v787 = vld [vmem:[%s760 + $0xd0] sm:$0xff]
    %v788 = vld [vmem:[%s760 + $0xd8] sm:$0xff]
    %v789 = vld [vmem:[%s760 + $0xe0] sm:$0xff]
    %v790 = vld [vmem:[%s760 + $0xe8] sm:$0xff]
    %v791 = vld [vmem:[%s760 + $0xf0] sm:$0xff]
    %v792 = vld [vmem:[%s760 + $0xf8] sm:$0xff]
    %s793 = scalar_lea.vmem %s6, 4
    %v794 = vld [vmem:[%s793] sm:$0x3]
    %v796 = vlaneseq
    %v797 = vshrl.u32 %v796, 7
    %v798 = vsub.s32 0, %v797
    %v799 = vrot.slane %v794, %v798
    %v800 = vlaneseq
    %v801 = vshrl.u32 %v800, 7
    %v802 = vsub.s32 1, %v801
    %v803 = vrot.slane %v794, %v802
    %v838 = vunpack.c.l.b16 %v761
    %v839 = vunpack.c.h.b16 %v761
    %v840 = vunpack.c.l.b16 %v762
    %v841 = vunpack.c.h.b16 %v762
    %v842 = vunpack.c.l.b16 %v763
    %v843 = vunpack.c.h.b16 %v763
    %v844 = vunpack.c.l.b16 %v764
    %v845 = vunpack.c.h.b16 %v764
    %v846 = vunpack.c.l.b16 %v765
    %v847 = vunpack.c.h.b16 %v765
    %v848 = vunpack.c.l.b16 %v766
    %v849 = vunpack.c.h.b16 %v766
    %v850 = vunpack.c.l.b16 %v767
    %v851 = vunpack.c.h.b16 %v767
    %v852 = vunpack.c.l.b16 %v768
    %v853 = vunpack.c.h.b16 %v768
    %v854 = vunpack.c.l.b16 %v769
    %v855 = vunpack.c.h.b16 %v769
    %v856 = vunpack.c.l.b16 %v770
    %v857 = vunpack.c.h.b16 %v770
    %v858 = vunpack.c.l.b16 %v771
    %v859 = vunpack.c.h.b16 %v771
    %v860 = vunpack.c.l.b16 %v772
    %v861 = vunpack.c.h.b16 %v772
    %v862 = vunpack.c.l.b16 %v773
    %v863 = vunpack.c.h.b16 %v773
    %v864 = vunpack.c.l.b16 %v774
    %v865 = vunpack.c.h.b16 %v774
    %v866 = vunpack.c.l.b16 %v775
    %v867 = vunpack.c.h.b16 %v775
    %v868 = vunpack.c.l.b16 %v776
    %v869 = vunpack.c.h.b16 %v776
    %v870 = vunpack.c.l.b16 %v777
    %v871 = vunpack.c.h.b16 %v777
    %v872 = vunpack.c.l.b16 %v778
    %v873 = vunpack.c.h.b16 %v778
    %v874 = vunpack.c.l.b16 %v779
    %v875 = vunpack.c.h.b16 %v779
    %v876 = vunpack.c.l.b16 %v780
    %v877 = vunpack.c.h.b16 %v780
    %v878 = vunpack.c.l.b16 %v781
    %v879 = vunpack.c.h.b16 %v781
    %v880 = vunpack.c.l.b16 %v782
    %v881 = vunpack.c.h.b16 %v782
    %v882 = vunpack.c.l.b16 %v783
    %v883 = vunpack.c.h.b16 %v783
    %v884 = vunpack.c.l.b16 %v784
    %v885 = vunpack.c.h.b16 %v784
    %v886 = vunpack.c.l.b16 %v785
    %v887 = vunpack.c.h.b16 %v785
    %v888 = vunpack.c.l.b16 %v786
    %v889 = vunpack.c.h.b16 %v786
    %v890 = vunpack.c.l.b16 %v787
    %v891 = vunpack.c.h.b16 %v787
    %v892 = vunpack.c.l.b16 %v788
    %v893 = vunpack.c.h.b16 %v788
    %v894 = vunpack.c.l.b16 %v789
    %v895 = vunpack.c.h.b16 %v789
    %v896 = vunpack.c.l.b16 %v790
    %v897 = vunpack.c.h.b16 %v790
    %v898 = vunpack.c.l.b16 %v791
    %v899 = vunpack.c.h.b16 %v791
    %v900 = vunpack.c.l.b16 %v792
    %v901 = vunpack.c.h.b16 %v792
    %v902 = vpack.c.b16 %v840, %v838
    %v903 = vpack.c.b16 %v841, %v839
    %v904 = vpack.c.b16 %v844, %v842
    %v905 = vpack.c.b16 %v845, %v843
    %v906 = vpack.c.b16 %v848, %v846
    %v907 = vpack.c.b16 %v849, %v847
    %v908 = vpack.c.b16 %v852, %v850
    %v909 = vpack.c.b16 %v853, %v851
    %v910 = vpack.c.b16 %v856, %v854
    %v911 = vpack.c.b16 %v857, %v855
    %v912 = vpack.c.b16 %v860, %v858
    %v913 = vpack.c.b16 %v861, %v859
    %v914 = vpack.c.b16 %v864, %v862
    %v915 = vpack.c.b16 %v865, %v863
    %v916 = vpack.c.b16 %v868, %v866
    %v917 = vpack.c.b16 %v869, %v867
    %v918 = vpack.c.b16 %v872, %v870
    %v919 = vpack.c.b16 %v873, %v871
    %v920 = vpack.c.b16 %v876, %v874
    %v921 = vpack.c.b16 %v877, %v875
    %v922 = vpack.c.b16 %v880, %v878
    %v923 = vpack.c.b16 %v881, %v879
    %v924 = vpack.c.b16 %v884, %v882
    %v925 = vpack.c.b16 %v885, %v883
    %v926 = vpack.c.b16 %v888, %v886
    %v927 = vpack.c.b16 %v889, %v887
    %v928 = vpack.c.b16 %v892, %v890
    %v929 = vpack.c.b16 %v893, %v891
    %v930 = vpack.c.b16 %v896, %v894
    %v931 = vpack.c.b16 %v897, %v895
    %v932 = vpack.c.b16 %v900, %v898
    %v933 = vpack.c.b16 %v901, %v899
    %966 = vmatprep.subr.bf16.mxu0 %v903
    %967 = vmatpush1.bf16.msra.mxu0 %v902
    %968 = vmatprep.subr.bf16.mxu0 %v905
    %969 = vmatpush1.bf16.msra.mxu0 %v904
    %970 = vmatprep.subr.bf16.mxu0 %v907
    %971 = vmatpush1.bf16.msra.mxu0 %v906
    %972 = vmatprep.subr.bf16.mxu0 %v909
    %973 = vmatpush1.bf16.msra.mxu0 %v908
    %974 = vmatprep.subr.bf16.mxu0 %v911
    %975 = vmatpush1.bf16.msra.mxu0 %v910
    %976 = vmatprep.subr.bf16.mxu0 %v913
    %977 = vmatpush1.bf16.msra.mxu0 %v912
    %978 = vmatprep.subr.bf16.mxu0 %v915
    %979 = vmatpush1.bf16.msra.mxu0 %v914
    %980 = vmatprep.subr.bf16.mxu0 %v917
    %981 = vmatpush1.bf16.msra.mxu0 %v916
    %982 = vmatprep.subr.bf16.mxu0 %v919
    %983 = vmatpush1.bf16.msra.mxu0 %v918
    %984 = vmatprep.subr.bf16.mxu0 %v921
    %985 = vmatpush1.bf16.msra.mxu0 %v920
    %986 = vmatprep.subr.bf16.mxu0 %v923
    %987 = vmatpush1.bf16.msra.mxu0 %v922
    %988 = vmatprep.subr.bf16.mxu0 %v925
    %989 = vmatpush1.bf16.msra.mxu0 %v924
    %990 = vmatprep.subr.bf16.mxu0 %v927
    %991 = vmatpush1.bf16.msra.mxu0 %v926
    %992 = vmatprep.subr.bf16.mxu0 %v929
    %993 = vmatpush1.bf16.msra.mxu0 %v928
    %994 = vmatprep.subr.bf16.mxu0 %v931
    %995 = vmatpush1.bf16.msra.mxu0 %v930
    %996 = vmatprep.subr.bf16.mxu0 %v933
    %997 = vmatpush1.bf16.msra.mxu0 %v932
    %998 = vmatprep.mubr.bf16.mxu0 %v759
    %999 = vmatmul.mubr.bf16.gmra.mrb[0].mxu0 %v758
    %v1000 = vpop.f32.mrb[0].mxu0
    %v1001 = vadd.f32 %v799, %v1000
    %v1002 = vpop.f32.mrb[0].mxu0
    %v1003 = vadd.f32 %v803, %v1002
    %v1004 = vpop.f32.mrb[0].mxu0
    %v1005 = vpop.f32.mrb[0].mxu0
    %1006 = vdwg.mxu0
    %v1007 = vpack.c.bf16 %v1001, %v1001
    %v1008 = vpack.c.bf16 %v1003, %v1003
    %v1009 = vmin.bf16 %v1007, 0
    %v1010 = vmin.bf16 %v1008, 0
    %v1012 = vmul.bf16 %v1009, 1069105081
    %v1013 = vpow.bf16.pop %v1012
    %v1015 = vmul.bf16 %v1010, 1069105081
    %v1016 = vpow.bf16.pop %v1015
    %v1017 = vsub.bf16 %v1013, 1065369472
    %v1018 = vsub.bf16 %v1016, 1065369472
    %v1019 = vmul.bf16 %v1017, 1071005654
    %v1020 = vmul.bf16 %v1018, 1071005654
    %vm1021 = vcmp.gt.bf16.partialorder %v1007, 0
    %vm1022 = vcmp.gt.bf16.partialorder %v1008, 0
    %v1023 = vsel %vm1021, %v1007, %v1019
    %v1024 = vsel %vm1022, %v1008, %v1020
    %s1025 = scalar_lea.vmem [#allocation4], 768
    %v1026 = vld [vmem:[%s1025] sm:$0xff]
    %v1027 = vld [vmem:[%s1025 + $0x8] sm:$0xff]
    %v1028 = vld [vmem:[%s1025 + $0x10] sm:$0xff]
    %v1029 = vld [vmem:[%s1025 + $0x18] sm:$0xff]
    %v1030 = vld [vmem:[%s1025 + $0x20] sm:$0xff]
    %v1031 = vld [vmem:[%s1025 + $0x28] sm:$0xff]
    %v1032 = vld [vmem:[%s1025 + $0x30] sm:$0xff]
    %v1033 = vld [vmem:[%s1025 + $0x38] sm:$0xff]
    %v1034 = vld [vmem:[%s1025 + $0x40] sm:$0xff]
    %v1035 = vld [vmem:[%s1025 + $0x48] sm:$0xff]
    %v1036 = vld [vmem:[%s1025 + $0x50] sm:$0xff]
    %v1037 = vld [vmem:[%s1025 + $0x58] sm:$0xff]
    %v1038 = vld [vmem:[%s1025 + $0x60] sm:$0xff]
    %v1039 = vld [vmem:[%s1025 + $0x68] sm:$0xff]
    %v1040 = vld [vmem:[%s1025 + $0x70] sm:$0xff]
    %v1041 = vld [vmem:[%s1025 + $0x78] sm:$0xff]
    %v1042 = vld [vmem:[%s1025 + $0x80] sm:$0xff]
    %v1043 = vld [vmem:[%s1025 + $0x88] sm:$0xff]
    %v1044 = vld [vmem:[%s1025 + $0x90] sm:$0xff]
    %v1045 = vld [vmem:[%s1025 + $0x98] sm:$0xff]
    %v1046 = vld [vmem:[%s1025 + $0xa0] sm:$0xff]
    %v1047 = vld [vmem:[%s1025 + $0xa8] sm:$0xff]
    %v1048 = vld [vmem:[%s1025 + $0xb0] sm:$0xff]
    %v1049 = vld [vmem:[%s1025 + $0xb8] sm:$0xff]
    %v1050 = vld [vmem:[%s1025 + $0xc0] sm:$0xff]
    %v1051 = vld [vmem:[%s1025 + $0xc8] sm:$0xff]
    %v1052 = vld [vmem:[%s1025 + $0xd0] sm:$0xff]
    %v1053 = vld [vmem:[%s1025 + $0xd8] sm:$0xff]
    %v1054 = vld [vmem:[%s1025 + $0xe0] sm:$0xff]
    %v1055 = vld [vmem:[%s1025 + $0xe8] sm:$0xff]
    %v1056 = vld [vmem:[%s1025 + $0xf0] sm:$0xff]
    %v1057 = vld [vmem:[%s1025 + $0xf8] sm:$0xff]
    %s1058 = scalar_lea.vmem %s6, 6
    %v1059 = vld [vmem:[%s1058] sm:$0x3]
    %v1061 = vlaneseq
    %v1062 = vshrl.u32 %v1061, 7
    %v1063 = vsub.s32 0, %v1062
    %v1064 = vrot.slane %v1059, %v1063
    %v1065 = vlaneseq
    %v1066 = vshrl.u32 %v1065, 7
    %v1067 = vsub.s32 1, %v1066
    %v1068 = vrot.slane %v1059, %v1067
    %v1103 = vunpack.c.l.b16 %v1026
    %v1104 = vunpack.c.h.b16 %v1026
    %v1105 = vunpack.c.l.b16 %v1027
    %v1106 = vunpack.c.h.b16 %v1027
    %v1107 = vunpack.c.l.b16 %v1028
    %v1108 = vunpack.c.h.b16 %v1028
    %v1109 = vunpack.c.l.b16 %v1029
    %v1110 = vunpack.c.h.b16 %v1029
    %v1111 = vunpack.c.l.b16 %v1030
    %v1112 = vunpack.c.h.b16 %v1030
    %v1113 = vunpack.c.l.b16 %v1031
    %v1114 = vunpack.c.h.b16 %v1031
    %v1115 = vunpack.c.l.b16 %v1032
    %v1116 = vunpack.c.h.b16 %v1032
    %v1117 = vunpack.c.l.b16 %v1033
    %v1118 = vunpack.c.h.b16 %v1033
    %v1119 = vunpack.c.l.b16 %v1034
    %v1120 = vunpack.c.h.b16 %v1034
    %v1121 = vunpack.c.l.b16 %v1035
    %v1122 = vunpack.c.h.b16 %v1035
    %v1123 = vunpack.c.l.b16 %v1036
    %v1124 = vunpack.c.h.b16 %v1036
    %v1125 = vunpack.c.l.b16 %v1037
    %v1126 = vunpack.c.h.b16 %v1037
    %v1127 = vunpack.c.l.b16 %v1038
    %v1128 = vunpack.c.h.b16 %v1038
    %v1129 = vunpack.c.l.b16 %v1039
    %v1130 = vunpack.c.h.b16 %v1039
    %v1131 = vunpack.c.l.b16 %v1040
    %v1132 = vunpack.c.h.b16 %v1040
    %v1133 = vunpack.c.l.b16 %v1041
    %v1134 = vunpack.c.h.b16 %v1041
    %v1135 = vunpack.c.l.b16 %v1042
    %v1136 = vunpack.c.h.b16 %v1042
    %v1137 = vunpack.c.l.b16 %v1043
    %v1138 = vunpack.c.h.b16 %v1043
    %v1139 = vunpack.c.l.b16 %v1044
    %v1140 = vunpack.c.h.b16 %v1044
    %v1141 = vunpack.c.l.b16 %v1045
    %v1142 = vunpack.c.h.b16 %v1045
    %v1143 = vunpack.c.l.b16 %v1046
    %v1144 = vunpack.c.h.b16 %v1046
    %v1145 = vunpack.c.l.b16 %v1047
    %v1146 = vunpack.c.h.b16 %v1047
    %v1147 = vunpack.c.l.b16 %v1048
    %v1148 = vunpack.c.h.b16 %v1048
    %v1149 = vunpack.c.l.b16 %v1049
    %v1150 = vunpack.c.h.b16 %v1049
    %v1151 = vunpack.c.l.b16 %v1050
    %v1152 = vunpack.c.h.b16 %v1050
    %v1153 = vunpack.c.l.b16 %v1051
    %v1154 = vunpack.c.h.b16 %v1051
    %v1155 = vunpack.c.l.b16 %v1052
    %v1156 = vunpack.c.h.b16 %v1052
    %v1157 = vunpack.c.l.b16 %v1053
    %v1158 = vunpack.c.h.b16 %v1053
    %v1159 = vunpack.c.l.b16 %v1054
    %v1160 = vunpack.c.h.b16 %v1054
    %v1161 = vunpack.c.l.b16 %v1055
    %v1162 = vunpack.c.h.b16 %v1055
    %v1163 = vunpack.c.l.b16 %v1056
    %v1164 = vunpack.c.h.b16 %v1056
    %v1165 = vunpack.c.l.b16 %v1057
    %v1166 = vunpack.c.h.b16 %v1057
    %v1167 = vpack.c.b16 %v1105, %v1103
    %v1168 = vpack.c.b16 %v1106, %v1104
    %v1169 = vpack.c.b16 %v1109, %v1107
    %v1170 = vpack.c.b16 %v1110, %v1108
    %v1171 = vpack.c.b16 %v1113, %v1111
    %v1172 = vpack.c.b16 %v1114, %v1112
    %v1173 = vpack.c.b16 %v1117, %v1115
    %v1174 = vpack.c.b16 %v1118, %v1116
    %v1175 = vpack.c.b16 %v1121, %v1119
    %v1176 = vpack.c.b16 %v1122, %v1120
    %v1177 = vpack.c.b16 %v1125, %v1123
    %v1178 = vpack.c.b16 %v1126, %v1124
    %v1179 = vpack.c.b16 %v1129, %v1127
    %v1180 = vpack.c.b16 %v1130, %v1128
    %v1181 = vpack.c.b16 %v1133, %v1131
    %v1182 = vpack.c.b16 %v1134, %v1132
    %v1183 = vpack.c.b16 %v1137, %v1135
    %v1184 = vpack.c.b16 %v1138, %v1136
    %v1185 = vpack.c.b16 %v1141, %v1139
    %v1186 = vpack.c.b16 %v1142, %v1140
    %v1187 = vpack.c.b16 %v1145, %v1143
    %v1188 = vpack.c.b16 %v1146, %v1144
    %v1189 = vpack.c.b16 %v1149, %v1147
    %v1190 = vpack.c.b16 %v1150, %v1148
    %v1191 = vpack.c.b16 %v1153, %v1151
    %v1192 = vpack.c.b16 %v1154, %v1152
    %v1193 = vpack.c.b16 %v1157, %v1155
    %v1194 = vpack.c.b16 %v1158, %v1156
    %v1195 = vpack.c.b16 %v1161, %v1159
    %v1196 = vpack.c.b16 %v1162, %v1160
    %v1197 = vpack.c.b16 %v1165, %v1163
    %v1198 = vpack.c.b16 %v1166, %v1164
    %1231 = vmatprep.subr.bf16.mxu0 %v1168
    %1232 = vmatpush1.bf16.msra.mxu0 %v1167
    %1233 = vmatprep.subr.bf16.mxu0 %v1170
    %1234 = vmatpush1.bf16.msra.mxu0 %v1169
    %1235 = vmatprep.subr.bf16.mxu0 %v1172
    %1236 = vmatpush1.bf16.msra.mxu0 %v1171
    %1237 = vmatprep.subr.bf16.mxu0 %v1174
    %1238 = vmatpush1.bf16.msra.mxu0 %v1173
    %1239 = vmatprep.subr.bf16.mxu0 %v1176
    %1240 = vmatpush1.bf16.msra.mxu0 %v1175
    %1241 = vmatprep.subr.bf16.mxu0 %v1178
    %1242 = vmatpush1.bf16.msra.mxu0 %v1177
    %1243 = vmatprep.subr.bf16.mxu0 %v1180
    %1244 = vmatpush1.bf16.msra.mxu0 %v1179
    %1245 = vmatprep.subr.bf16.mxu0 %v1182
    %1246 = vmatpush1.bf16.msra.mxu0 %v1181
    %1247 = vmatprep.subr.bf16.mxu0 %v1184
    %1248 = vmatpush1.bf16.msra.mxu0 %v1183
    %1249 = vmatprep.subr.bf16.mxu0 %v1186
    %1250 = vmatpush1.bf16.msra.mxu0 %v1185
    %1251 = vmatprep.subr.bf16.mxu0 %v1188
    %1252 = vmatpush1.bf16.msra.mxu0 %v1187
    %1253 = vmatprep.subr.bf16.mxu0 %v1190
    %1254 = vmatpush1.bf16.msra.mxu0 %v1189
    %1255 = vmatprep.subr.bf16.mxu0 %v1192
    %1256 = vmatpush1.bf16.msra.mxu0 %v1191
    %1257 = vmatprep.subr.bf16.mxu0 %v1194
    %1258 = vmatpush1.bf16.msra.mxu0 %v1193
    %1259 = vmatprep.subr.bf16.mxu0 %v1196
    %1260 = vmatpush1.bf16.msra.mxu0 %v1195
    %1261 = vmatprep.subr.bf16.mxu0 %v1198
    %1262 = vmatpush1.bf16.msra.mxu0 %v1197
    %1263 = vmatprep.mubr.bf16.mxu0 %v1024
    %1264 = vmatmul.mubr.bf16.gmra.mrb[0].mxu0 %v1023
    %v1265 = vpop.f32.mrb[0].mxu0
    %v1266 = vadd.f32 %v1064, %v1265
    %v1267 = vpop.f32.mrb[0].mxu0
    %v1268 = vadd.f32 %v1068, %v1267
    %v1269 = vpop.f32.mrb[0].mxu0
    %v1270 = vpop.f32.mrb[0].mxu0
    %1271 = vdwg.mxu0
    %v1272 = vpack.c.bf16 %v1266, %v1266
    %v1273 = vpack.c.bf16 %v1268, %v1268
    %v1274 = vmin.bf16 %v1272, 0
    %v1275 = vmin.bf16 %v1273, 0
    %v1277 = vmul.bf16 %v1274, 1069105081
    %v1278 = vpow.bf16.pop %v1277
    %v1280 = vmul.bf16 %v1275, 1069105081
    %v1281 = vpow.bf16.pop %v1280
    %v1282 = vsub.bf16 %v1278, 1065369472
    %v1283 = vsub.bf16 %v1281, 1065369472
    %v1284 = vmul.bf16 %v1282, 1071005654
    %v1285 = vmul.bf16 %v1283, 1071005654
    %vm1286 = vcmp.gt.bf16.partialorder %v1272, 0
    %vm1287 = vcmp.gt.bf16.partialorder %v1273, 0
    %v1288 = vsel %vm1286, %v1272, %v1284
    %v1289 = vsel %vm1287, %v1273, %v1285
    %s1290 = scalar_lea.vmem [#allocation4], 1024
    %v1291 = vld [vmem:[%s1290] sm:$0xff]
    %v1292 = vld [vmem:[%s1290 + $0x8] sm:$0xff]
    %v1293 = vld [vmem:[%s1290 + $0x10] sm:$0xff]
    %v1294 = vld [vmem:[%s1290 + $0x18] sm:$0xff]
    %v1295 = vld [vmem:[%s1290 + $0x20] sm:$0xff]
    %v1296 = vld [vmem:[%s1290 + $0x28] sm:$0xff]
    %v1297 = vld [vmem:[%s1290 + $0x30] sm:$0xff]
    %v1298 = vld [vmem:[%s1290 + $0x38] sm:$0xff]
    %v1299 = vld [vmem:[%s1290 + $0x40] sm:$0xff]
    %v1300 = vld [vmem:[%s1290 + $0x48] sm:$0xff]
    %v1301 = vld [vmem:[%s1290 + $0x50] sm:$0xff]
    %v1302 = vld [vmem:[%s1290 + $0x58] sm:$0xff]
    %v1303 = vld [vmem:[%s1290 + $0x60] sm:$0xff]
    %v1304 = vld [vmem:[%s1290 + $0x68] sm:$0xff]
    %v1305 = vld [vmem:[%s1290 + $0x70] sm:$0xff]
    %v1306 = vld [vmem:[%s1290 + $0x78] sm:$0xff]
    %v1307 = vld [vmem:[%s1290 + $0x80] sm:$0xff]
    %v1308 = vld [vmem:[%s1290 + $0x88] sm:$0xff]
    %v1309 = vld [vmem:[%s1290 + $0x90] sm:$0xff]
    %v1310 = vld [vmem:[%s1290 + $0x98] sm:$0xff]
    %v1311 = vld [vmem:[%s1290 + $0xa0] sm:$0xff]
    %v1312 = vld [vmem:[%s1290 + $0xa8] sm:$0xff]
    %v1313 = vld [vmem:[%s1290 + $0xb0] sm:$0xff]
    %v1314 = vld [vmem:[%s1290 + $0xb8] sm:$0xff]
    %v1315 = vld [vmem:[%s1290 + $0xc0] sm:$0xff]
    %v1316 = vld [vmem:[%s1290 + $0xc8] sm:$0xff]
    %v1317 = vld [vmem:[%s1290 + $0xd0] sm:$0xff]
    %v1318 = vld [vmem:[%s1290 + $0xd8] sm:$0xff]
    %v1319 = vld [vmem:[%s1290 + $0xe0] sm:$0xff]
    %v1320 = vld [vmem:[%s1290 + $0xe8] sm:$0xff]
    %v1321 = vld [vmem:[%s1290 + $0xf0] sm:$0xff]
    %v1322 = vld [vmem:[%s1290 + $0xf8] sm:$0xff]
    %s1323 = scalar_lea.vmem %s6, 8
    %v1324 = vld [vmem:[%s1323] sm:$0x3]
    %v1326 = vlaneseq
    %v1327 = vshrl.u32 %v1326, 7
    %v1328 = vsub.s32 0, %v1327
    %v1329 = vrot.slane %v1324, %v1328
    %v1330 = vlaneseq
    %v1331 = vshrl.u32 %v1330, 7
    %v1332 = vsub.s32 1, %v1331
    %v1333 = vrot.slane %v1324, %v1332
    %v1368 = vunpack.c.l.b16 %v1291
    %v1369 = vunpack.c.h.b16 %v1291
    %v1370 = vunpack.c.l.b16 %v1292
    %v1371 = vunpack.c.h.b16 %v1292
    %v1372 = vunpack.c.l.b16 %v1293
    %v1373 = vunpack.c.h.b16 %v1293
    %v1374 = vunpack.c.l.b16 %v1294
    %v1375 = vunpack.c.h.b16 %v1294
    %v1376 = vunpack.c.l.b16 %v1295
    %v1377 = vunpack.c.h.b16 %v1295
    %v1378 = vunpack.c.l.b16 %v1296
    %v1379 = vunpack.c.h.b16 %v1296
    %v1380 = vunpack.c.l.b16 %v1297
    %v1381 = vunpack.c.h.b16 %v1297
    %v1382 = vunpack.c.l.b16 %v1298
    %v1383 = vunpack.c.h.b16 %v1298
    %v1384 = vunpack.c.l.b16 %v1299
    %v1385 = vunpack.c.h.b16 %v1299
    %v1386 = vunpack.c.l.b16 %v1300
    %v1387 = vunpack.c.h.b16 %v1300
    %v1388 = vunpack.c.l.b16 %v1301
    %v1389 = vunpack.c.h.b16 %v1301
    %v1390 = vunpack.c.l.b16 %v1302
    %v1391 = vunpack.c.h.b16 %v1302
    %v1392 = vunpack.c.l.b16 %v1303
    %v1393 = vunpack.c.h.b16 %v1303
    %v1394 = vunpack.c.l.b16 %v1304
    %v1395 = vunpack.c.h.b16 %v1304
    %v1396 = vunpack.c.l.b16 %v1305
    %v1397 = vunpack.c.h.b16 %v1305
    %v1398 = vunpack.c.l.b16 %v1306
    %v1399 = vunpack.c.h.b16 %v1306
    %v1400 = vunpack.c.l.b16 %v1307
    %v1401 = vunpack.c.h.b16 %v1307
    %v1402 = vunpack.c.l.b16 %v1308
    %v1403 = vunpack.c.h.b16 %v1308
    %v1404 = vunpack.c.l.b16 %v1309
    %v1405 = vunpack.c.h.b16 %v1309
    %v1406 = vunpack.c.l.b16 %v1310
    %v1407 = vunpack.c.h.b16 %v1310
    %v1408 = vunpack.c.l.b16 %v1311
    %v1409 = vunpack.c.h.b16 %v1311
    %v1410 = vunpack.c.l.b16 %v1312
    %v1411 = vunpack.c.h.b16 %v1312
    %v1412 = vunpack.c.l.b16 %v1313
    %v1413 = vunpack.c.h.b16 %v1313
    %v1414 = vunpack.c.l.b16 %v1314
    %v1415 = vunpack.c.h.b16 %v1314
    %v1416 = vunpack.c.l.b16 %v1315
    %v1417 = vunpack.c.h.b16 %v1315
    %v1418 = vunpack.c.l.b16 %v1316
    %v1419 = vunpack.c.h.b16 %v1316
    %v1420 = vunpack.c.l.b16 %v1317
    %v1421 = vunpack.c.h.b16 %v1317
    %v1422 = vunpack.c.l.b16 %v1318
    %v1423 = vunpack.c.h.b16 %v1318
    %v1424 = vunpack.c.l.b16 %v1319
    %v1425 = vunpack.c.h.b16 %v1319
    %v1426 = vunpack.c.l.b16 %v1320
    %v1427 = vunpack.c.h.b16 %v1320
    %v1428 = vunpack.c.l.b16 %v1321
    %v1429 = vunpack.c.h.b16 %v1321
    %v1430 = vunpack.c.l.b16 %v1322
    %v1431 = vunpack.c.h.b16 %v1322
    %v1432 = vpack.c.b16 %v1370, %v1368
    %v1433 = vpack.c.b16 %v1371, %v1369
    %v1434 = vpack.c.b16 %v1374, %v1372
    %v1435 = vpack.c.b16 %v1375, %v1373
    %v1436 = vpack.c.b16 %v1378, %v1376
    %v1437 = vpack.c.b16 %v1379, %v1377
    %v1438 = vpack.c.b16 %v1382, %v1380
    %v1439 = vpack.c.b16 %v1383, %v1381
    %v1440 = vpack.c.b16 %v1386, %v1384
    %v1441 = vpack.c.b16 %v1387, %v1385
    %v1442 = vpack.c.b16 %v1390, %v1388
    %v1443 = vpack.c.b16 %v1391, %v1389
    %v1444 = vpack.c.b16 %v1394, %v1392
    %v1445 = vpack.c.b16 %v1395, %v1393
    %v1446 = vpack.c.b16 %v1398, %v1396
    %v1447 = vpack.c.b16 %v1399, %v1397
    %v1448 = vpack.c.b16 %v1402, %v1400
    %v1449 = vpack.c.b16 %v1403, %v1401
    %v1450 = vpack.c.b16 %v1406, %v1404
    %v1451 = vpack.c.b16 %v1407, %v1405
    %v1452 = vpack.c.b16 %v1410, %v1408
    %v1453 = vpack.c.b16 %v1411, %v1409
    %v1454 = vpack.c.b16 %v1414, %v1412
    %v1455 = vpack.c.b16 %v1415, %v1413
    %v1456 = vpack.c.b16 %v1418, %v1416
    %v1457 = vpack.c.b16 %v1419, %v1417
    %v1458 = vpack.c.b16 %v1422, %v1420
    %v1459 = vpack.c.b16 %v1423, %v1421
    %v1460 = vpack.c.b16 %v1426, %v1424
    %v1461 = vpack.c.b16 %v1427, %v1425
    %v1462 = vpack.c.b16 %v1430, %v1428
    %v1463 = vpack.c.b16 %v1431, %v1429
    %1496 = vmatprep.subr.bf16.mxu0 %v1433
    %1497 = vmatpush1.bf16.msra.mxu0 %v1432
    %1498 = vmatprep.subr.bf16.mxu0 %v1435
    %1499 = vmatpush1.bf16.msra.mxu0 %v1434
    %1500 = vmatprep.subr.bf16.mxu0 %v1437
    %1501 = vmatpush1.bf16.msra.mxu0 %v1436
    %1502 = vmatprep.subr.bf16.mxu0 %v1439
    %1503 = vmatpush1.bf16.msra.mxu0 %v1438
    %1504 = vmatprep.subr.bf16.mxu0 %v1441
    %1505 = vmatpush1.bf16.msra.mxu0 %v1440
    %1506 = vmatprep.subr.bf16.mxu0 %v1443
    %1507 = vmatpush1.bf16.msra.mxu0 %v1442
    %1508 = vmatprep.subr.bf16.mxu0 %v1445
    %1509 = vmatpush1.bf16.msra.mxu0 %v1444
    %1510 = vmatprep.subr.bf16.mxu0 %v1447
    %1511 = vmatpush1.bf16.msra.mxu0 %v1446
    %1512 = vmatprep.subr.bf16.mxu0 %v1449
    %1513 = vmatpush1.bf16.msra.mxu0 %v1448
    %1514 = vmatprep.subr.bf16.mxu0 %v1451
    %1515 = vmatpush1.bf16.msra.mxu0 %v1450
    %1516 = vmatprep.subr.bf16.mxu0 %v1453
    %1517 = vmatpush1.bf16.msra.mxu0 %v1452
    %1518 = vmatprep.subr.bf16.mxu0 %v1455
    %1519 = vmatpush1.bf16.msra.mxu0 %v1454
    %1520 = vmatprep.subr.bf16.mxu0 %v1457
    %1521 = vmatpush1.bf16.msra.mxu0 %v1456
    %1522 = vmatprep.subr.bf16.mxu0 %v1459
    %1523 = vmatpush1.bf16.msra.mxu0 %v1458
    %1524 = vmatprep.subr.bf16.mxu0 %v1461
    %1525 = vmatpush1.bf16.msra.mxu0 %v1460
    %1526 = vmatprep.subr.bf16.mxu0 %v1463
    %1527 = vmatpush1.bf16.msra.mxu0 %v1462
    %1528 = vmatprep.mubr.bf16.mxu0 %v1289
    %1529 = vmatmul.mubr.bf16.gmra.mrb[0].mxu0 %v1288
    %v1530 = vpop.f32.mrb[0].mxu0
    %v1531 = vadd.f32 %v1329, %v1530
    %v1532 = vpop.f32.mrb[0].mxu0
    %v1533 = vadd.f32 %v1333, %v1532
    %v1534 = vpop.f32.mrb[0].mxu0
    %v1535 = vpop.f32.mrb[0].mxu0
    %1536 = vdwg.mxu0
    %v1537 = vpack.c.bf16 %v1531, %v1531
    %v1538 = vpack.c.bf16 %v1533, %v1533
    %v1539 = vmin.bf16 %v1537, 0
    %v1540 = vmin.bf16 %v1538, 0
    %v1542 = vmul.bf16 %v1539, 1069105081
    %v1543 = vpow.bf16.pop %v1542
    %v1545 = vmul.bf16 %v1540, 1069105081
    %v1546 = vpow.bf16.pop %v1545
    %v1547 = vsub.bf16 %v1543, 1065369472
    %v1548 = vsub.bf16 %v1546, 1065369472
    %v1549 = vmul.bf16 %v1547, 1071005654
    %v1550 = vmul.bf16 %v1548, 1071005654
    %vm1551 = vcmp.gt.bf16.partialorder %v1537, 0
    %vm1552 = vcmp.gt.bf16.partialorder %v1538, 0
    %v1553 = vsel %vm1551, %v1537, %v1549
    %v1554 = vsel %vm1552, %v1538, %v1550
    %s1555 = scalar_lea.vmem [#allocation4], 1280
    %v1556 = vld [vmem:[%s1555] sm:$0xff]
    %v1557 = vld [vmem:[%s1555 + $0x8] sm:$0xff]
    %v1558 = vld [vmem:[%s1555 + $0x10] sm:$0xff]
    %v1559 = vld [vmem:[%s1555 + $0x18] sm:$0xff]
    %v1560 = vld [vmem:[%s1555 + $0x20] sm:$0xff]
    %v1561 = vld [vmem:[%s1555 + $0x28] sm:$0xff]
    %v1562 = vld [vmem:[%s1555 + $0x30] sm:$0xff]
    %v1563 = vld [vmem:[%s1555 + $0x38] sm:$0xff]
    %v1564 = vld [vmem:[%s1555 + $0x40] sm:$0xff]
    %v1565 = vld [vmem:[%s1555 + $0x48] sm:$0xff]
    %v1566 = vld [vmem:[%s1555 + $0x50] sm:$0xff]
    %v1567 = vld [vmem:[%s1555 + $0x58] sm:$0xff]
    %v1568 = vld [vmem:[%s1555 + $0x60] sm:$0xff]
    %v1569 = vld [vmem:[%s1555 + $0x68] sm:$0xff]
    %v1570 = vld [vmem:[%s1555 + $0x70] sm:$0xff]
    %v1571 = vld [vmem:[%s1555 + $0x78] sm:$0xff]
    %v1572 = vld [vmem:[%s1555 + $0x80] sm:$0xff]
    %v1573 = vld [vmem:[%s1555 + $0x88] sm:$0xff]
    %v1574 = vld [vmem:[%s1555 + $0x90] sm:$0xff]
    %v1575 = vld [vmem:[%s1555 + $0x98] sm:$0xff]
    %v1576 = vld [vmem:[%s1555 + $0xa0] sm:$0xff]
    %v1577 = vld [vmem:[%s1555 + $0xa8] sm:$0xff]
    %v1578 = vld [vmem:[%s1555 + $0xb0] sm:$0xff]
    %v1579 = vld [vmem:[%s1555 + $0xb8] sm:$0xff]
    %v1580 = vld [vmem:[%s1555 + $0xc0] sm:$0xff]
    %v1581 = vld [vmem:[%s1555 + $0xc8] sm:$0xff]
    %v1582 = vld [vmem:[%s1555 + $0xd0] sm:$0xff]
    %v1583 = vld [vmem:[%s1555 + $0xd8] sm:$0xff]
    %v1584 = vld [vmem:[%s1555 + $0xe0] sm:$0xff]
    %v1585 = vld [vmem:[%s1555 + $0xe8] sm:$0xff]
    %v1586 = vld [vmem:[%s1555 + $0xf0] sm:$0xff]
    %v1587 = vld [vmem:[%s1555 + $0xf8] sm:$0xff]
    %s1588 = scalar_lea.vmem %s6, 10
    %v1589 = vld [vmem:[%s1588] sm:$0x3]
    %v1591 = vlaneseq
    %v1592 = vshrl.u32 %v1591, 7
    %v1593 = vsub.s32 0, %v1592
    %v1594 = vrot.slane %v1589, %v1593
    %v1595 = vlaneseq
    %v1596 = vshrl.u32 %v1595, 7
    %v1597 = vsub.s32 1, %v1596
    %v1598 = vrot.slane %v1589, %v1597
    %v1633 = vunpack.c.l.b16 %v1556
    %v1634 = vunpack.c.h.b16 %v1556
    %v1635 = vunpack.c.l.b16 %v1557
    %v1636 = vunpack.c.h.b16 %v1557
    %v1637 = vunpack.c.l.b16 %v1558
    %v1638 = vunpack.c.h.b16 %v1558
    %v1639 = vunpack.c.l.b16 %v1559
    %v1640 = vunpack.c.h.b16 %v1559
    %v1641 = vunpack.c.l.b16 %v1560
    %v1642 = vunpack.c.h.b16 %v1560
    %v1643 = vunpack.c.l.b16 %v1561
    %v1644 = vunpack.c.h.b16 %v1561
    %v1645 = vunpack.c.l.b16 %v1562
    %v1646 = vunpack.c.h.b16 %v1562
    %v1647 = vunpack.c.l.b16 %v1563
    %v1648 = vunpack.c.h.b16 %v1563
    %v1649 = vunpack.c.l.b16 %v1564
    %v1650 = vunpack.c.h.b16 %v1564
    %v1651 = vunpack.c.l.b16 %v1565
    %v1652 = vunpack.c.h.b16 %v1565
    %v1653 = vunpack.c.l.b16 %v1566
    %v1654 = vunpack.c.h.b16 %v1566
    %v1655 = vunpack.c.l.b16 %v1567
    %v1656 = vunpack.c.h.b16 %v1567
    %v1657 = vunpack.c.l.b16 %v1568
    %v1658 = vunpack.c.h.b16 %v1568
    %v1659 = vunpack.c.l.b16 %v1569
    %v1660 = vunpack.c.h.b16 %v1569
    %v1661 = vunpack.c.l.b16 %v1570
    %v1662 = vunpack.c.h.b16 %v1570
    %v1663 = vunpack.c.l.b16 %v1571
    %v1664 = vunpack.c.h.b16 %v1571
    %v1665 = vunpack.c.l.b16 %v1572
    %v1666 = vunpack.c.h.b16 %v1572
    %v1667 = vunpack.c.l.b16 %v1573
    %v1668 = vunpack.c.h.b16 %v1573
    %v1669 = vunpack.c.l.b16 %v1574
    %v1670 = vunpack.c.h.b16 %v1574
    %v1671 = vunpack.c.l.b16 %v1575
    %v1672 = vunpack.c.h.b16 %v1575
    %v1673 = vunpack.c.l.b16 %v1576
    %v1674 = vunpack.c.h.b16 %v1576
    %v1675 = vunpack.c.l.b16 %v1577
    %v1676 = vunpack.c.h.b16 %v1577
    %v1677 = vunpack.c.l.b16 %v1578
    %v1678 = vunpack.c.h.b16 %v1578
    %v1679 = vunpack.c.l.b16 %v1579
    %v1680 = vunpack.c.h.b16 %v1579
    %v1681 = vunpack.c.l.b16 %v1580
    %v1682 = vunpack.c.h.b16 %v1580
    %v1683 = vunpack.c.l.b16 %v1581
    %v1684 = vunpack.c.h.b16 %v1581
    %v1685 = vunpack.c.l.b16 %v1582
    %v1686 = vunpack.c.h.b16 %v1582
    %v1687 = vunpack.c.l.b16 %v1583
    %v1688 = vunpack.c.h.b16 %v1583
    %v1689 = vunpack.c.l.b16 %v1584
    %v1690 = vunpack.c.h.b16 %v1584
    %v1691 = vunpack.c.l.b16 %v1585
    %v1692 = vunpack.c.h.b16 %v1585
    %v1693 = vunpack.c.l.b16 %v1586
    %v1694 = vunpack.c.h.b16 %v1586
    %v1695 = vunpack.c.l.b16 %v1587
    %v1696 = vunpack.c.h.b16 %v1587
    %v1697 = vpack.c.b16 %v1635, %v1633
    %v1698 = vpack.c.b16 %v1636, %v1634
    %v1699 = vpack.c.b16 %v1639, %v1637
    %v1700 = vpack.c.b16 %v1640, %v1638
    %v1701 = vpack.c.b16 %v1643, %v1641
    %v1702 = vpack.c.b16 %v1644, %v1642
    %v1703 = vpack.c.b16 %v1647, %v1645
    %v1704 = vpack.c.b16 %v1648, %v1646
    %v1705 = vpack.c.b16 %v1651, %v1649
    %v1706 = vpack.c.b16 %v1652, %v1650
    %v1707 = vpack.c.b16 %v1655, %v1653
    %v1708 = vpack.c.b16 %v1656, %v1654
    %v1709 = vpack.c.b16 %v1659, %v1657
    %v1710 = vpack.c.b16 %v1660, %v1658
    %v1711 = vpack.c.b16 %v1663, %v1661
    %v1712 = vpack.c.b16 %v1664, %v1662
    %v1713 = vpack.c.b16 %v1667, %v1665
    %v1714 = vpack.c.b16 %v1668, %v1666
    %v1715 = vpack.c.b16 %v1671, %v1669
    %v1716 = vpack.c.b16 %v1672, %v1670
    %v1717 = vpack.c.b16 %v1675, %v1673
    %v1718 = vpack.c.b16 %v1676, %v1674
    %v1719 = vpack.c.b16 %v1679, %v1677
    %v1720 = vpack.c.b16 %v1680, %v1678
    %v1721 = vpack.c.b16 %v1683, %v1681
    %v1722 = vpack.c.b16 %v1684, %v1682
    %v1723 = vpack.c.b16 %v1687, %v1685
    %v1724 = vpack.c.b16 %v1688, %v1686
    %v1725 = vpack.c.b16 %v1691, %v1689
    %v1726 = vpack.c.b16 %v1692, %v1690
    %v1727 = vpack.c.b16 %v1695, %v1693
    %v1728 = vpack.c.b16 %v1696, %v1694
    %1761 = vmatprep.subr.bf16.mxu0 %v1698
    %1762 = vmatpush1.bf16.msra.mxu0 %v1697
    %1763 = vmatprep.subr.bf16.mxu0 %v1700
    %1764 = vmatpush1.bf16.msra.mxu0 %v1699
    %1765 = vmatprep.subr.bf16.mxu0 %v1702
    %1766 = vmatpush1.bf16.msra.mxu0 %v1701
    %1767 = vmatprep.subr.bf16.mxu0 %v1704
    %1768 = vmatpush1.bf16.msra.mxu0 %v1703
    %1769 = vmatprep.subr.bf16.mxu0 %v1706
    %1770 = vmatpush1.bf16.msra.mxu0 %v1705
    %1771 = vmatprep.subr.bf16.mxu0 %v1708
    %1772 = vmatpush1.bf16.msra.mxu0 %v1707
    %1773 = vmatprep.subr.bf16.mxu0 %v1710
    %1774 = vmatpush1.bf16.msra.mxu0 %v1709
    %1775 = vmatprep.subr.bf16.mxu0 %v1712
    %1776 = vmatpush1.bf16.msra.mxu0 %v1711
    %1777 = vmatprep.subr.bf16.mxu0 %v1714
    %1778 = vmatpush1.bf16.msra.mxu0 %v1713
    %1779 = vmatprep.subr.bf16.mxu0 %v1716
    %1780 = vmatpush1.bf16.msra.mxu0 %v1715
    %1781 = vmatprep.subr.bf16.mxu0 %v1718
    %1782 = vmatpush1.bf16.msra.mxu0 %v1717
    %1783 = vmatprep.subr.bf16.mxu0 %v1720
    %1784 = vmatpush1.bf16.msra.mxu0 %v1719
    %1785 = vmatprep.subr.bf16.mxu0 %v1722
    %1786 = vmatpush1.bf16.msra.mxu0 %v1721
    %1787 = vmatprep.subr.bf16.mxu0 %v1724
    %1788 = vmatpush1.bf16.msra.mxu0 %v1723
    %1789 = vmatprep.subr.bf16.mxu0 %v1726
    %1790 = vmatpush1.bf16.msra.mxu0 %v1725
    %1791 = vmatprep.subr.bf16.mxu0 %v1728
    %1792 = vmatpush1.bf16.msra.mxu0 %v1727
    %1793 = vmatprep.mubr.bf16.mxu0 %v1554
    %1794 = vmatmul.mubr.bf16.gmra.mrb[0].mxu0 %v1553
    %v1795 = vpop.f32.mrb[0].mxu0
    %v1796 = vadd.f32 %v1594, %v1795
    %v1797 = vpop.f32.mrb[0].mxu0
    %v1798 = vadd.f32 %v1598, %v1797
    %v1799 = vpop.f32.mrb[0].mxu0
    %v1800 = vpop.f32.mrb[0].mxu0
    %1801 = vdwg.mxu0
    %v1802 = vpack.c.bf16 %v1796, %v1796
    %v1803 = vpack.c.bf16 %v1798, %v1798
    %v1804 = vmin.bf16 %v1802, 0
    %v1805 = vmin.bf16 %v1803, 0
    %v1807 = vmul.bf16 %v1804, 1069105081
    %v1808 = vpow.bf16.pop %v1807
    %v1810 = vmul.bf16 %v1805, 1069105081
    %v1811 = vpow.bf16.pop %v1810
    %v1812 = vsub.bf16 %v1808, 1065369472
    %v1813 = vsub.bf16 %v1811, 1065369472
    %v1814 = vmul.bf16 %v1812, 1071005654
    %v1815 = vmul.bf16 %v1813, 1071005654
    %vm1816 = vcmp.gt.bf16.partialorder %v1802, 0
    %vm1817 = vcmp.gt.bf16.partialorder %v1803, 0
    %v1818 = vsel %vm1816, %v1802, %v1814
    %v1819 = vsel %vm1817, %v1803, %v1815
    %s1820 = scalar_lea.vmem [#allocation4], 1536
    %v1821 = vld [vmem:[%s1820] sm:$0xff]
    %v1822 = vld [vmem:[%s1820 + $0x8] sm:$0xff]
    %v1823 = vld [vmem:[%s1820 + $0x10] sm:$0xff]
    %v1824 = vld [vmem:[%s1820 + $0x18] sm:$0xff]
    %v1825 = vld [vmem:[%s1820 + $0x20] sm:$0xff]
    %v1826 = vld [vmem:[%s1820 + $0x28] sm:$0xff]
    %v1827 = vld [vmem:[%s1820 + $0x30] sm:$0xff]
    %v1828 = vld [vmem:[%s1820 + $0x38] sm:$0xff]
    %v1829 = vld [vmem:[%s1820 + $0x40] sm:$0xff]
    %v1830 = vld [vmem:[%s1820 + $0x48] sm:$0xff]
    %v1831 = vld [vmem:[%s1820 + $0x50] sm:$0xff]
    %v1832 = vld [vmem:[%s1820 + $0x58] sm:$0xff]
    %v1833 = vld [vmem:[%s1820 + $0x60] sm:$0xff]
    %v1834 = vld [vmem:[%s1820 + $0x68] sm:$0xff]
    %v1835 = vld [vmem:[%s1820 + $0x70] sm:$0xff]
    %v1836 = vld [vmem:[%s1820 + $0x78] sm:$0xff]
    %v1837 = vld [vmem:[%s1820 + $0x80] sm:$0xff]
    %v1838 = vld [vmem:[%s1820 + $0x88] sm:$0xff]
    %v1839 = vld [vmem:[%s1820 + $0x90] sm:$0xff]
    %v1840 = vld [vmem:[%s1820 + $0x98] sm:$0xff]
    %v1841 = vld [vmem:[%s1820 + $0xa0] sm:$0xff]
    %v1842 = vld [vmem:[%s1820 + $0xa8] sm:$0xff]
    %v1843 = vld [vmem:[%s1820 + $0xb0] sm:$0xff]
    %v1844 = vld [vmem:[%s1820 + $0xb8] sm:$0xff]
    %v1845 = vld [vmem:[%s1820 + $0xc0] sm:$0xff]
    %v1846 = vld [vmem:[%s1820 + $0xc8] sm:$0xff]
    %v1847 = vld [vmem:[%s1820 + $0xd0] sm:$0xff]
    %v1848 = vld [vmem:[%s1820 + $0xd8] sm:$0xff]
    %v1849 = vld [vmem:[%s1820 + $0xe0] sm:$0xff]
    %v1850 = vld [vmem:[%s1820 + $0xe8] sm:$0xff]
    %v1851 = vld [vmem:[%s1820 + $0xf0] sm:$0xff]
    %v1852 = vld [vmem:[%s1820 + $0xf8] sm:$0xff]
    %s1853 = scalar_lea.vmem %s6, 12
    %v1854 = vld [vmem:[%s1853] sm:$0x3]
    %v1856 = vlaneseq
    %v1857 = vshrl.u32 %v1856, 7
    %v1858 = vsub.s32 0, %v1857
    %v1859 = vrot.slane %v1854, %v1858
    %v1860 = vlaneseq
    %v1861 = vshrl.u32 %v1860, 7
    %v1862 = vsub.s32 1, %v1861
    %v1863 = vrot.slane %v1854, %v1862
    %v1898 = vunpack.c.l.b16 %v1821
    %v1899 = vunpack.c.h.b16 %v1821
    %v1900 = vunpack.c.l.b16 %v1822
    %v1901 = vunpack.c.h.b16 %v1822
    %v1902 = vunpack.c.l.b16 %v1823
    %v1903 = vunpack.c.h.b16 %v1823
    %v1904 = vunpack.c.l.b16 %v1824
    %v1905 = vunpack.c.h.b16 %v1824
    %v1906 = vunpack.c.l.b16 %v1825
    %v1907 = vunpack.c.h.b16 %v1825
    %v1908 = vunpack.c.l.b16 %v1826
    %v1909 = vunpack.c.h.b16 %v1826
    %v1910 = vunpack.c.l.b16 %v1827
    %v1911 = vunpack.c.h.b16 %v1827
    %v1912 = vunpack.c.l.b16 %v1828
    %v1913 = vunpack.c.h.b16 %v1828
    %v1914 = vunpack.c.l.b16 %v1829
    %v1915 = vunpack.c.h.b16 %v1829
    %v1916 = vunpack.c.l.b16 %v1830
    %v1917 = vunpack.c.h.b16 %v1830
    %v1918 = vunpack.c.l.b16 %v1831
    %v1919 = vunpack.c.h.b16 %v1831
    %v1920 = vunpack.c.l.b16 %v1832
    %v1921 = vunpack.c.h.b16 %v1832
    %v1922 = vunpack.c.l.b16 %v1833
    %v1923 = vunpack.c.h.b16 %v1833
    %v1924 = vunpack.c.l.b16 %v1834
    %v1925 = vunpack.c.h.b16 %v1834
    %v1926 = vunpack.c.l.b16 %v1835
    %v1927 = vunpack.c.h.b16 %v1835
    %v1928 = vunpack.c.l.b16 %v1836
    %v1929 = vunpack.c.h.b16 %v1836
    %v1930 = vunpack.c.l.b16 %v1837
    %v1931 = vunpack.c.h.b16 %v1837
    %v1932 = vunpack.c.l.b16 %v1838
    %v1933 = vunpack.c.h.b16 %v1838
    %v1934 = vunpack.c.l.b16 %v1839
    %v1935 = vunpack.c.h.b16 %v1839
    %v1936 = vunpack.c.l.b16 %v1840
    %v1937 = vunpack.c.h.b16 %v1840
    %v1938 = vunpack.c.l.b16 %v1841
    %v1939 = vunpack.c.h.b16 %v1841
    %v1940 = vunpack.c.l.b16 %v1842
    %v1941 = vunpack.c.h.b16 %v1842
    %v1942 = vunpack.c.l.b16 %v1843
    %v1943 = vunpack.c.h.b16 %v1843
    %v1944 = vunpack.c.l.b16 %v1844
    %v1945 = vunpack.c.h.b16 %v1844
    %v1946 = vunpack.c.l.b16 %v1845
    %v1947 = vunpack.c.h.b16 %v1845
    %v1948 = vunpack.c.l.b16 %v1846
    %v1949 = vunpack.c.h.b16 %v1846
    %v1950 = vunpack.c.l.b16 %v1847
    %v1951 = vunpack.c.h.b16 %v1847
    %v1952 = vunpack.c.l.b16 %v1848
    %v1953 = vunpack.c.h.b16 %v1848
    %v1954 = vunpack.c.l.b16 %v1849
    %v1955 = vunpack.c.h.b16 %v1849
    %v1956 = vunpack.c.l.b16 %v1850
    %v1957 = vunpack.c.h.b16 %v1850
    %v1958 = vunpack.c.l.b16 %v1851
    %v1959 = vunpack.c.h.b16 %v1851
    %v1960 = vunpack.c.l.b16 %v1852
    %v1961 = vunpack.c.h.b16 %v1852
    %v1962 = vpack.c.b16 %v1900, %v1898
    %v1963 = vpack.c.b16 %v1901, %v1899
    %v1964 = vpack.c.b16 %v1904, %v1902
    %v1965 = vpack.c.b16 %v1905, %v1903
    %v1966 = vpack.c.b16 %v1908, %v1906
    %v1967 = vpack.c.b16 %v1909, %v1907
    %v1968 = vpack.c.b16 %v1912, %v1910
    %v1969 = vpack.c.b16 %v1913, %v1911
    %v1970 = vpack.c.b16 %v1916, %v1914
    %v1971 = vpack.c.b16 %v1917, %v1915
    %v1972 = vpack.c.b16 %v1920, %v1918
    %v1973 = vpack.c.b16 %v1921, %v1919
    %v1974 = vpack.c.b16 %v1924, %v1922
    %v1975 = vpack.c.b16 %v1925, %v1923
    %v1976 = vpack.c.b16 %v1928, %v1926
    %v1977 = vpack.c.b16 %v1929, %v1927
    %v1978 = vpack.c.b16 %v1932, %v1930
    %v1979 = vpack.c.b16 %v1933, %v1931
    %v1980 = vpack.c.b16 %v1936, %v1934
    %v1981 = vpack.c.b16 %v1937, %v1935
    %v1982 = vpack.c.b16 %v1940, %v1938
    %v1983 = vpack.c.b16 %v1941, %v1939
    %v1984 = vpack.c.b16 %v1944, %v1942
    %v1985 = vpack.c.b16 %v1945, %v1943
    %v1986 = vpack.c.b16 %v1948, %v1946
    %v1987 = vpack.c.b16 %v1949, %v1947
    %v1988 = vpack.c.b16 %v1952, %v1950
    %v1989 = vpack.c.b16 %v1953, %v1951
    %v1990 = vpack.c.b16 %v1956, %v1954
    %v1991 = vpack.c.b16 %v1957, %v1955
    %v1992 = vpack.c.b16 %v1960, %v1958
    %v1993 = vpack.c.b16 %v1961, %v1959
    %2026 = vmatprep.subr.bf16.mxu0 %v1963
    %2027 = vmatpush1.bf16.msra.mxu0 %v1962
    %2028 = vmatprep.subr.bf16.mxu0 %v1965
    %2029 = vmatpush1.bf16.msra.mxu0 %v1964
    %2030 = vmatprep.subr.bf16.mxu0 %v1967
    %2031 = vmatpush1.bf16.msra.mxu0 %v1966
    %2032 = vmatprep.subr.bf16.mxu0 %v1969
    %2033 = vmatpush1.bf16.msra.mxu0 %v1968
    %2034 = vmatprep.subr.bf16.mxu0 %v1971
    %2035 = vmatpush1.bf16.msra.mxu0 %v1970
    %2036 = vmatprep.subr.bf16.mxu0 %v1973
    %2037 = vmatpush1.bf16.msra.mxu0 %v1972
    %2038 = vmatprep.subr.bf16.mxu0 %v1975
    %2039 = vmatpush1.bf16.msra.mxu0 %v1974
    %2040 = vmatprep.subr.bf16.mxu0 %v1977
    %2041 = vmatpush1.bf16.msra.mxu0 %v1976
    %2042 = vmatprep.subr.bf16.mxu0 %v1979
    %2043 = vmatpush1.bf16.msra.mxu0 %v1978
    %2044 = vmatprep.subr.bf16.mxu0 %v1981
    %2045 = vmatpush1.bf16.msra.mxu0 %v1980
    %2046 = vmatprep.subr.bf16.mxu0 %v1983
    %2047 = vmatpush1.bf16.msra.mxu0 %v1982
    %2048 = vmatprep.subr.bf16.mxu0 %v1985
    %2049 = vmatpush1.bf16.msra.mxu0 %v1984
    %2050 = vmatprep.subr.bf16.mxu0 %v1987
    %2051 = vmatpush1.bf16.msra.mxu0 %v1986
    %2052 = vmatprep.subr.bf16.mxu0 %v1989
    %2053 = vmatpush1.bf16.msra.mxu0 %v1988
    %2054 = vmatprep.subr.bf16.mxu0 %v1991
    %2055 = vmatpush1.bf16.msra.mxu0 %v1990
    %2056 = vmatprep.subr.bf16.mxu0 %v1993
    %2057 = vmatpush1.bf16.msra.mxu0 %v1992
    %2058 = vmatprep.mubr.bf16.mxu0 %v1819
    %2059 = vmatmul.mubr.bf16.gmra.mrb[0].mxu0 %v1818
    %v2060 = vpop.f32.mrb[0].mxu0
    %v2061 = vadd.f32 %v1859, %v2060
    %v2062 = vpop.f32.mrb[0].mxu0
    %v2063 = vadd.f32 %v1863, %v2062
    %v2064 = vpop.f32.mrb[0].mxu0
    %v2065 = vpop.f32.mrb[0].mxu0
    %2066 = vdwg.mxu0
    %v2067 = vpack.c.bf16 %v2061, %v2061
    %v2068 = vpack.c.bf16 %v2063, %v2063
    %v2069 = vmin.bf16 %v2067, 0
    %v2070 = vmin.bf16 %v2068, 0
    %v2072 = vmul.bf16 %v2069, 1069105081
    %v2073 = vpow.bf16.pop %v2072
    %v2075 = vmul.bf16 %v2070, 1069105081
    %v2076 = vpow.bf16.pop %v2075
    %v2077 = vsub.bf16 %v2073, 1065369472
    %v2078 = vsub.bf16 %v2076, 1065369472
    %v2079 = vmul.bf16 %v2077, 1071005654
    %v2080 = vmul.bf16 %v2078, 1071005654
    %vm2081 = vcmp.gt.bf16.partialorder %v2067, 0
    %vm2082 = vcmp.gt.bf16.partialorder %v2068, 0
    %v2083 = vsel %vm2081, %v2067, %v2079
    %v2084 = vsel %vm2082, %v2068, %v2080
    %v2085 = vld [vmem:[#allocation6] sm:$0xf]
    %v2086 = vld [vmem:[#allocation6 + $0x4] sm:$0xf]
    %v2087 = vld [vmem:[#allocation6 + $0x8] sm:$0xf]
    %v2088 = vld [vmem:[#allocation6 + $0xc] sm:$0xf]
    %v2089 = vld [vmem:[#allocation6 + $0x10] sm:$0xf]
    %v2090 = vld [vmem:[#allocation6 + $0x14] sm:$0xf]
    %v2091 = vld [vmem:[#allocation6 + $0x18] sm:$0xf]
    %v2092 = vld [vmem:[#allocation6 + $0x1c] sm:$0xf]
    %v2093 = vld [vmem:[#allocation6 + $0x20] sm:$0xf]
    %v2094 = vld [vmem:[#allocation6 + $0x24] sm:$0xf]
    %v2095 = vld [vmem:[#allocation6 + $0x28] sm:$0xf]
    %v2096 = vld [vmem:[#allocation6 + $0x2c] sm:$0xf]
    %v2097 = vld [vmem:[#allocation6 + $0x30] sm:$0xf]
    %v2098 = vld [vmem:[#allocation6 + $0x34] sm:$0xf]
    %v2099 = vld [vmem:[#allocation6 + $0x38] sm:$0xf]
    %v2100 = vld [vmem:[#allocation6 + $0x3c] sm:$0xf]
    %v2101 = vld [vmem:[#allocation6 + $0x40] sm:$0xf]
    %v2102 = vld [vmem:[#allocation6 + $0x44] sm:$0xf]
    %v2103 = vld [vmem:[#allocation6 + $0x48] sm:$0xf]
    %v2104 = vld [vmem:[#allocation6 + $0x4c] sm:$0xf]
    %v2105 = vld [vmem:[#allocation6 + $0x50] sm:$0xf]
    %v2106 = vld [vmem:[#allocation6 + $0x54] sm:$0xf]
    %v2107 = vld [vmem:[#allocation6 + $0x58] sm:$0xf]
    %v2108 = vld [vmem:[#allocation6 + $0x5c] sm:$0xf]
    %v2109 = vld [vmem:[#allocation6 + $0x60] sm:$0xf]
    %v2110 = vld [vmem:[#allocation6 + $0x64] sm:$0xf]
    %v2111 = vld [vmem:[#allocation6 + $0x68] sm:$0xf]
    %v2112 = vld [vmem:[#allocation6 + $0x6c] sm:$0xf]
    %v2113 = vld [vmem:[#allocation6 + $0x70] sm:$0xf]
    %v2114 = vld [vmem:[#allocation6 + $0x74] sm:$0xf]
    %v2115 = vld [vmem:[#allocation6 + $0x78] sm:$0xf]
    %v2116 = vld [vmem:[#allocation6 + $0x7c] sm:$0xf]
    %v2117 = vld [vmem:[%s8] sm:$0x1]
    %v2119 = vlaneseq
    %v2120 = vshrl.u32 %v2119, 7
    %v2121 = vsub.s32 0, %v2120
    %v2122 = vrot.slane %v2117, %v2121
    %v2156 = vunpack.c.l.b16 %v2085
    %v2157 = vunpack.c.l.b16 %v2086
    %v2158 = vunpack.c.l.b16 %v2087
    %v2159 = vunpack.c.l.b16 %v2088
    %v2160 = vunpack.c.l.b16 %v2089
    %v2161 = vunpack.c.l.b16 %v2090
    %v2162 = vunpack.c.l.b16 %v2091
    %v2163 = vunpack.c.l.b16 %v2092
    %v2164 = vunpack.c.l.b16 %v2093
    %v2165 = vunpack.c.l.b16 %v2094
    %v2166 = vunpack.c.l.b16 %v2095
    %v2167 = vunpack.c.l.b16 %v2096
    %v2168 = vunpack.c.l.b16 %v2097
    %v2169 = vunpack.c.l.b16 %v2098
    %v2170 = vunpack.c.l.b16 %v2099
    %v2171 = vunpack.c.l.b16 %v2100
    %v2172 = vunpack.c.l.b16 %v2101
    %v2173 = vunpack.c.l.b16 %v2102
    %v2174 = vunpack.c.l.b16 %v2103
    %v2175 = vunpack.c.l.b16 %v2104
    %v2176 = vunpack.c.l.b16 %v2105
    %v2177 = vunpack.c.l.b16 %v2106
    %v2178 = vunpack.c.l.b16 %v2107
    %v2179 = vunpack.c.l.b16 %v2108
    %v2180 = vunpack.c.l.b16 %v2109
    %v2181 = vunpack.c.l.b16 %v2110
    %v2182 = vunpack.c.l.b16 %v2111
    %v2183 = vunpack.c.l.b16 %v2112
    %v2184 = vunpack.c.l.b16 %v2113
    %v2185 = vunpack.c.l.b16 %v2114
    %v2186 = vunpack.c.l.b16 %v2115
    %v2187 = vunpack.c.l.b16 %v2116
    %v2188 = vpack.c.b16 %v2157, %v2156
    %v2189 = vpack.c.b16 %v2159, %v2158
    %v2190 = vpack.c.b16 %v2161, %v2160
    %v2191 = vpack.c.b16 %v2163, %v2162
    %v2192 = vpack.c.b16 %v2165, %v2164
    %v2193 = vpack.c.b16 %v2167, %v2166
    %v2194 = vpack.c.b16 %v2169, %v2168
    %v2195 = vpack.c.b16 %v2171, %v2170
    %v2196 = vpack.c.b16 %v2173, %v2172
    %v2197 = vpack.c.b16 %v2175, %v2174
    %v2198 = vpack.c.b16 %v2177, %v2176
    %v2199 = vpack.c.b16 %v2179, %v2178
    %v2200 = vpack.c.b16 %v2181, %v2180
    %v2201 = vpack.c.b16 %v2183, %v2182
    %v2202 = vpack.c.b16 %v2185, %v2184
    %v2203 = vpack.c.b16 %v2187, %v2186
    %2220 = vmatprep.subr.bf16.mxu0 0
    %2221 = vmatpush1.bf16.msra.mxu0 %v2188
    %2222 = vmatprep.subr.bf16.mxu0 0
    %2223 = vmatpush1.bf16.msra.mxu0 %v2189
    %2224 = vmatprep.subr.bf16.mxu0 0
    %2225 = vmatpush1.bf16.msra.mxu0 %v2190
    %2226 = vmatprep.subr.bf16.mxu0 0
    %2227 = vmatpush1.bf16.msra.mxu0 %v2191
    %2228 = vmatprep.subr.bf16.mxu0 0
    %2229 = vmatpush1.bf16.msra.mxu0 %v2192
    %2230 = vmatprep.subr.bf16.mxu0 0
    %2231 = vmatpush1.bf16.msra.mxu0 %v2193
    %2232 = vmatprep.subr.bf16.mxu0 0
    %2233 = vmatpush1.bf16.msra.mxu0 %v2194
    %2234 = vmatprep.subr.bf16.mxu0 0
    %2235 = vmatpush1.bf16.msra.mxu0 %v2195
    %2236 = vmatprep.subr.bf16.mxu0 0
    %2237 = vmatpush1.bf16.msra.mxu0 %v2196
    %2238 = vmatprep.subr.bf16.mxu0 0
    %2239 = vmatpush1.bf16.msra.mxu0 %v2197
    %2240 = vmatprep.subr.bf16.mxu0 0
    %2241 = vmatpush1.bf16.msra.mxu0 %v2198
    %2242 = vmatprep.subr.bf16.mxu0 0
    %2243 = vmatpush1.bf16.msra.mxu0 %v2199
    %2244 = vmatprep.subr.bf16.mxu0 0
    %2245 = vmatpush1.bf16.msra.mxu0 %v2200
    %2246 = vmatprep.subr.bf16.mxu0 0
    %2247 = vmatpush1.bf16.msra.mxu0 %v2201
    %2248 = vmatprep.subr.bf16.mxu0 0
    %2249 = vmatpush1.bf16.msra.mxu0 %v2202
    %2250 = vmatprep.subr.bf16.mxu0 0
    %2251 = vmatpush1.bf16.msra.mxu0 %v2203
    %2252 = vmatprep.mubr.bf16.mxu0 %v2084
    %2253 = vmatmul.mubr.bf16.gmra.mrb[0].mxu0 %v2083
    %v2254 = vpop.f32.mrb[0].mxu0
    %v2255 = vadd.f32 %v2122, %v2254
    %v2256 = vpop.f32.mrb[0].mxu0
    %v2257 = vpop.f32.mrb[0].mxu0
    %v2258 = vpop.f32.mrb[0].mxu0
    %2259 = vdwg.mxu0
    %2260 = vst [vmem:[%s9] sm:$0xff] %v2255
    // Predicated region
    $region50: #{normal_policy_forward.1} parent=1 // pred_check
      _
    $region51: #{normal_policy_forward.1} parent=1 // pred_check_branch
      %2262 = sbr.rel (0) target = $region53
    $region52: #{normal_policy_forward.1} parent=1 // pred_region
      _
    $region53: #{normal_policy_forward.1} parent=1 // pred_fallthru
      _
    // Predicated region
    $region54: #{normal_policy_forward.1} parent=1 // pred_check
      _
    $region55: #{normal_policy_forward.1} parent=1 // pred_check_branch
      %2264 = sbr.rel (0) target = $region57
    $region56: #{normal_policy_forward.1} parent=1 // pred_region
      _
    $region57: #{normal_policy_forward.1} parent=1 // pred_fallthru
      _
    %2265 = vsyncpa [#allocation3], 1
    %2266 = vsyncpa [#allocation5], 1

</llo_original>
